<compile_context>
chip_gen: v7x
topology: tpu7x:2x2x1
jax: 0.10.0
libtpu: 0.0.40
codegen_flags: <defaults>
</compile_context>

<pallas_src>
import math
import functools

import jax
import jax.numpy as jnp
from jax import lax
from jax.experimental import pallas as pl
from jax.experimental.pallas import tpu as pltpu

LN_EPS = 1e-12                      # BERT layer_norm_eps
VMEM_LIMIT = 32 * 1024 * 1024       # tight limit; real footprints are a few MiB
_INV_SQRT2 = 1.0 / math.sqrt(2.0)


def _pick_tile(dim, target, unit):
    """Largest multiple of `unit` that divides `dim` and is <= target; else dim.

    Guarantees block-shape legality: either the tile equals the full dim or it
    is a multiple of the required alignment unit.
    """
    if dim <= target:
        return dim
    t = (target // unit) * unit
    while t >= unit:
        if dim % t == 0:
            return t
        t -= unit
    return dim


# ----------------------------- Pallas kernels -----------------------------

def _matmul_bias_kernel(x_ref, w_ref, b_ref, o_ref, *, gelu):
    """Full-K x @ W + b (optional exact-erf GELU); bf16 MXU inputs, f32 math."""
    h = jnp.dot(x_ref[...], w_ref[...], preferred_element_type=jnp.float32)
    h = h + b_ref[...]
    if gelu:
        # TODO(synk): on v5e consider the tanh-approx GELU (EUP) if the erf
        # polynomial ever shows up as the VALU bottleneck in this epilogue.
        h = 0.5 * h * (1.0 + lax.erf(h * _INV_SQRT2))
    o_ref[...] = h.astype(o_ref.dtype)


def _matmul_bias_res_ln_kernel(x_ref, w_ref, b_ref, res_ref, g_ref, bt_ref, o_ref):
    """Full-K x @ W + b, fused residual add + LayerNorm (full hidden width)."""
    h = jnp.dot(x_ref[...], w_ref[...], preferred_element_type=jnp.float32)
    h = h + b_ref[...] + res_ref[...].astype(jnp.float32)
    mu = jnp.mean(h, axis=-1, keepdims=True)
    var = jnp.mean((h - mu) ** 2, axis=-1, keepdims=True)
    o_ref[...] = ((h - mu) * lax.rsqrt(var + LN_EPS) * g_ref[...]
                  + bt_ref[...]).astype(o_ref.dtype)


def _emb_ln_kernel(w_ref, t_ref, p_ref, g_ref, b_ref, o_ref):
    """word + type + position embeddings, then LayerNorm.  bf16 output."""
    h = w_ref[0] + t_ref[0] + p_ref[...]
    mu = jnp.mean(h, axis=-1, keepdims=True)
    var = jnp.mean((h - mu) ** 2, axis=-1, keepdims=True)
    o_ref[0] = ((h - mu) * lax.rsqrt(var + LN_EPS) * g_ref[...]
                + b_ref[...]).astype(o_ref.dtype)


def _attend_one_head(q, k, v, mask, scale):
    """Single-head attention; q/k/v (S, dh) bf16, mask (1, S) f32 additive."""
    # pre-scale q: S*dh muls instead of S*S
    s = lax.dot_general(q * scale, k, (((1,), (1,)), ((), ())),
                        preferred_element_type=jnp.float32)
    s = s + mask
    s = s - jnp.max(s, axis=-1, keepdims=True)
    p = jnp.exp(s)
    p = p * pl.reciprocal(jnp.sum(p, axis=-1, keepdims=True), approx=True)
    return jnp.dot(p.astype(v.dtype), v, preferred_element_type=jnp.float32)


def _attn_heads_kernel(q_ref, k_ref, v_ref, m_ref, o_ref, *, heads, head_dim, scale):
    """One (batch, head-group) per grid step; q/k/v blocks are 128-lane slabs.

    TODO(synk): for long sequences (>~2K) switch to an online-softmax (flash)
    loop over KV tiles instead of materializing the full (S, S) score matrix.
    """
    mask = m_ref[0]                                        # (1, S) f32
    for h in range(heads):
        lo = h * head_dim
        ctx = _attend_one_head(q_ref[0, :, lo:lo + head_dim],
                               k_ref[0, :, lo:lo + head_dim],
                               v_ref[0, :, lo:lo + head_dim],
                               mask, scale)
        o_ref[0, :, lo:lo + head_dim] = ctx.astype(o_ref.dtype)


def _attn_packed_kernel(qkv_ref, m_ref, o_ref, *, num_heads, head_dim, scale):
    """Fallback for small configs: one batch element per step, all heads here."""
    H = num_heads * head_dim
    qkv = qkv_ref[0]                                       # (S, 3H) bf16
    mask = m_ref[0]                                        # (1, S)  f32
    for h in range(num_heads):
        lo = h * head_dim
        ctx = _attend_one_head(qkv[:, lo:lo + head_dim],
                               qkv[:, H + lo:H + lo + head_dim],
                               qkv[:, 2 * H + lo:2 * H + lo + head_dim],
                               mask, scale)
        o_ref[0, :, lo:lo + head_dim] = ctx.astype(o_ref.dtype)


# ----------------------------- wrappers -----------------------------

def matmul_bias(x, w, b, *, gelu=False, out_dtype=jnp.bfloat16, tm=256, tn=2048):
    """Full-K tiled, pipelined x @ W + b (optional GELU).  x, W are bf16."""
    M, K = x.shape
    _, N = w.shape
    tm = _pick_tile(M, tm, 16)      # bf16 min tile is (16, 128) on sublanes
    tn = _pick_tile(N, tn, 128)
    grid = (M // tm, N // tn)
    kern = functools.partial(_matmul_bias_kernel, gelu=gelu)
    return pl.pallas_call(
        kern,
        out_shape=jax.ShapeDtypeStruct((M, N), out_dtype),
        grid=grid,
        in_specs=[
            pl.BlockSpec((tm, K), lambda i, j: (i, 0)),
            pl.BlockSpec((K, tn), lambda i, j: (0, j)),
            pl.BlockSpec((1, tn), lambda i, j: (0, j)),
        ],
        out_specs=pl.BlockSpec((tm, tn), lambda i, j: (i, j)),
        compiler_params=pltpu.CompilerParams(
            dimension_semantics=("parallel", "parallel"),
            vmem_limit_bytes=VMEM_LIMIT),
    )(x, w, b.reshape(1, N))


def matmul_bias_res_ln(x, w, b, res, gamma, beta, *, tm=256):
    """Full-K x @ W + b, fused residual add + LayerNorm epilogue.  bf16 output."""
    M, K = x.shape
    _, N = w.shape
    tm = _pick_tile(M, tm, 16)
    grid = (M // tm,)
    return pl.pallas_call(
        _matmul_bias_res_ln_kernel,
        out_shape=jax.ShapeDtypeStruct((M, N), jnp.bfloat16),
        grid=grid,
        in_specs=[
            pl.BlockSpec((tm, K), lambda i: (i, 0)),
            pl.BlockSpec((K, N), lambda i: (0, 0)),
            pl.BlockSpec((1, N), lambda i: (0, 0)),
            pl.BlockSpec((tm, N), lambda i: (i, 0)),
            pl.BlockSpec((1, N), lambda i: (0, 0)),
            pl.BlockSpec((1, N), lambda i: (0, 0)),
        ],
        out_specs=pl.BlockSpec((tm, N), lambda i: (i, 0)),
        compiler_params=pltpu.CompilerParams(
            dimension_semantics=("parallel",),
            vmem_limit_bytes=VMEM_LIMIT),
    )(x, w, b.reshape(1, N), res, gamma.reshape(1, N), beta.reshape(1, N))


def emb_layernorm(we, te, pe, gamma, beta, B, S, *, ts=256):
    """Embedding sum + LayerNorm.  pos_emb is indexed via the BlockSpec (no
    materialized broadcast).  bf16 output of shape (B, S, H)."""
    H = we.shape[-1]
    ts = _pick_tile(S, ts, 8)
    we3 = we.reshape(B, S, H)
    te3 = te.reshape(B, S, H)
    spec3 = pl.BlockSpec((1, ts, H), lambda b, s: (b, s, 0))
    pspec = pl.BlockSpec((ts, H), lambda b, s: (s, 0))
    vspec = pl.BlockSpec((1, H), lambda b, s: (0, 0))
    return pl.pallas_call(
        _emb_ln_kernel,
        out_shape=jax.ShapeDtypeStruct((B, S, H), jnp.bfloat16),
        grid=(B, S // ts),
        in_specs=[spec3, spec3, pspec, vspec, vspec],
        out_specs=spec3,
        compiler_params=pltpu.CompilerParams(
            dimension_semantics=("parallel", "parallel"),
            vmem_limit_bytes=VMEM_LIMIT),
    )(we3, te3, pe, gamma.reshape(1, H), beta.reshape(1, H))


def attention(qkv, mask_add, B, S, num_heads, head_dim):
    """Multi-head self-attention on the packed (B*S, 3H) QKV projection.

    The packed QKV is laid out head-major within each of the Q/K/V regions, so
    per-head-group slabs are directly BlockSpec-addressable (no transposes).
    """
    H = num_heads * head_dim
    qkv3 = qkv.reshape(B, S, 3 * H)            # free reshape, no transpose
    scale = 1.0 / math.sqrt(head_dim)

    if head_dim % 128 == 0:
        hpg = 1                                # one >=128-lane head per step
    elif 128 % head_dim == 0 and num_heads % (128 // head_dim) == 0:
        hpg = 128 // head_dim                  # group heads to a 128-lane slab
    else:
        hpg = None                             # small/odd config -> fallback

    if hpg is not None:
        G = hpg * head_dim
        n_groups = num_heads // hpg
        kern = functools.partial(_attn_heads_kernel, heads=hpg,
                                 head_dim=head_dim, scale=scale)
        return pl.pallas_call(
            kern,
            out_shape=jax.ShapeDtypeStruct((B, S, H), jnp.bfloat16),
            grid=(B, n_groups),
            in_specs=[
                pl.BlockSpec((1, S, G), lambda b, g: (b, 0, g)),
                pl.BlockSpec((1, S, G), lambda b, g: (b, 0, n_groups + g)),
                pl.BlockSpec((1, S, G), lambda b, g: (b, 0, 2 * n_groups + g)),
                pl.BlockSpec((1, 1, S), lambda b, g: (b, 0, 0)),
            ],
            out_specs=pl.BlockSpec((1, S, G), lambda b, g: (b, 0, g)),
            compiler_params=pltpu.CompilerParams(
                dimension_semantics=("parallel", "parallel"),
                vmem_limit_bytes=VMEM_LIMIT),
        )(qkv3, qkv3, qkv3, mask_add)

    # fallback: whole (S, 3H) block per batch element (tiny head_dim configs)
    kern = functools.partial(_attn_packed_kernel, num_heads=num_heads,
                             head_dim=head_dim, scale=scale)
    return pl.pallas_call(
        kern,
        out_shape=jax.ShapeDtypeStruct((B, S, H), jnp.bfloat16),
        grid=(B,),
        in_specs=[pl.BlockSpec((1, S, 3 * H), lambda b: (b, 0, 0)),
                  pl.BlockSpec((1, 1, S), lambda b: (b, 0, 0))],
        out_specs=pl.BlockSpec((1, S, H), lambda b: (b, 0, 0)),
        compiler_params=pltpu.CompilerParams(
            dimension_semantics=("parallel",),
            vmem_limit_bytes=VMEM_LIMIT),
    )(qkv3, mask_add)


# ----------------------------- BERT forward -----------------------------

def bert_encoder_forward(params, input_ids, token_type_ids, attention_mask, cfg):
    B, S = input_ids.shape
    H, nH = cfg["hidden"], cfg["heads"]
    dh = H // nH
    M = B * S

    # embedding gathers are glue (data-dependent gather); sum + LN is in-kernel
    we = jnp.take(params["word_emb"], input_ids.reshape(-1), axis=0)
    te = jnp.take(params["type_emb"], token_type_ids.reshape(-1), axis=0)
    pe = params["pos_emb"][:S]                             # (S, H), no broadcast
    x = emb_layernorm(we, te, pe, params["emb_ln_g"], params["emb_ln_b"],
                      B, S).reshape(M, H)                  # bf16 residual stream

    # additive attention mask, as in HF BERT: (1 - mask) * large_negative
    mask_add = ((1.0 - attention_mask.astype(jnp.float32)) * -1e9).reshape(B, 1, S)

    for lyr in params["layers"]:
        # fused QKV projection (1 matmul instead of 3), bf16 output for the MXU
        qkv = matmul_bias(x, lyr["wqkv"], lyr["bqkv"])
        ctx = attention(qkv, mask_add, B, S, nH, dh).reshape(M, H)
        # output projection + residual add + LayerNorm fused
        x = matmul_bias_res_ln(ctx, lyr["wo"], lyr["bo"], x,
                               lyr["ln1_g"], lyr["ln1_b"])
        # FFN up-projection + exact GELU fused
        h = matmul_bias(x, lyr["w1"], lyr["b1"], gelu=True)
        # FFN down-projection + residual add + LayerNorm fused
        x = matmul_bias_res_ln(h, lyr["w2"], lyr["b2"], x,
                               lyr["ln2_g"], lyr["ln2_b"])

    # == model(**inputs).last_hidden_state (bf16 stream, f32 at the interface)
    return x.reshape(B, S, H).astype(jnp.float32)


# ----------------------------- param init -----------------------------

def init_params(key, cfg):
    H, I = cfg["hidden"], cfg["intermediate"]

    def nrm(k, shape, dtype=jnp.float32):
        return (jax.random.normal(k, shape, jnp.float32) * 0.02).astype(dtype)

    keys = jax.random.split(key, 3 + cfg["layers"] * 6)
    params = {
        "word_emb": nrm(keys[0], (cfg["vocab"], H)),
        "pos_emb": nrm(keys[1], (cfg["max_pos"], H)),
        "type_emb": nrm(keys[2], (cfg["type_vocab"], H)),
        "emb_ln_g": jnp.ones((H,), jnp.float32),
        "emb_ln_b": jnp.zeros((H,), jnp.float32),
        "layers": [],
    }
    ki = 3
    for _ in range(cfg["layers"]):
        k = keys[ki:ki + 6]; ki += 6
        wq = nrm(k[0], (H, H)); wk = nrm(k[1], (H, H)); wv = nrm(k[2], (H, H))
        params["layers"].append({
            # fused QKV weight (H, 3H); within each Q/K/V block the columns are
            # head-major (head 0 first), matching the attention BlockSpecs.
            "wqkv": jnp.concatenate([wq, wk, wv], axis=1).astype(jnp.bfloat16),
            "bqkv": jnp.zeros((3 * H,), jnp.float32),
            "wo": nrm(k[3], (H, H), jnp.bfloat16),
            "bo": jnp.zeros((H,), jnp.float32),
            "ln1_g": jnp.ones((H,), jnp.float32),
            "ln1_b": jnp.zeros((H,), jnp.float32),
            "w1": nrm(k[4], (H, I), jnp.bfloat16),
            "b1": jnp.zeros((I,), jnp.float32),
            "w2": nrm(k[5], (I, H), jnp.bfloat16),
            "b2": jnp.zeros((H,), jnp.float32),
            "ln2_g": jnp.ones((H,), jnp.float32),
            "ln2_b": jnp.zeros((H,), jnp.float32),
        })
    return params


# ----------------------------- main -----------------------------

if __name__ == "__main__":
    cfg = dict(vocab=100, hidden=32, heads=4, layers=2,
               intermediate=64, max_pos=16, type_vocab=2)
    B, S = 2, 8

    key = jax.random.PRNGKey(0)
    kp, kid = jax.random.split(key)
    params = init_params(kp, cfg)

    input_ids = jax.random.randint(kid, (B, S), 0, cfg["vocab"], jnp.int32)
    token_type_ids = jnp.zeros((B, S), jnp.int32)
    attention_mask = jnp.ones((B, S), jnp.int32)

    fwd = jax.jit(functools.partial(bert_encoder_forward, cfg=cfg))
    out = fwd(params, input_ids, token_type_ids, attention_mask)
    out = jax.block_until_ready(out)

    assert out.shape == (B, S, cfg["hidden"]), out.shape
    assert bool(jnp.all(jnp.isfinite(out)))
    print("KERNEL_OK")
</pallas_src>

<mosaic_0001>
module attributes {stable_mosaic.version = 11 : i64} {
  func.func @_emb_ln_kernel(%arg0: i32, %arg1: i32, %arg2: memref<1x8x32xf32, #tpu.memory_space<vmem>>, %arg3: memref<1x8x32xf32, #tpu.memory_space<vmem>>, %arg4: memref<8x32xf32, #tpu.memory_space<vmem>>, %arg5: memref<1x32xf32, #tpu.memory_space<vmem>>, %arg6: memref<1x32xf32, #tpu.memory_space<vmem>>, %arg7: memref<1x8x32xbf16, #tpu.memory_space<vmem>>) attributes {dimension_semantics = [#tpu.dimension_semantics<parallel>, #tpu.dimension_semantics<parallel>], iteration_bounds = array<i64: 2, 1>, scalar_prefetch = 0 : i64, scratch_operands = 0 : i64, tpu.core_type = #tpu.core_type<tc>, window_params = [{transform_indices = @transform_0, window_bounds = array<i64: 1, 8, 32>}, {transform_indices = @transform_1, window_bounds = array<i64: 1, 8, 32>}, {transform_indices = @transform_2, window_bounds = array<i64: 8, 32>}, {pipeline_mode = #tpu.pipeline_mode<synchronous>, transform_indices = @transform_3, window_bounds = array<i64: 1, 32>}, {pipeline_mode = #tpu.pipeline_mode<synchronous>, transform_indices = @transform_4, window_bounds = array<i64: 1, 32>}, {transform_indices = @transform_5, window_bounds = array<i64: 1, 8, 32>}]} {
    %c0 = arith.constant 0 : index
    %c0_0 = arith.constant 0 : index
    %c0_1 = arith.constant 0 : index
    %0 = vector.load %arg2[%c0, %c0_0, %c0_1] : memref<1x8x32xf32, #tpu.memory_space<vmem>>, vector<1x8x32xf32>
    %1 = vector.shape_cast %0 : vector<1x8x32xf32> to vector<8x32xf32>
    %c0_2 = arith.constant 0 : index
    %c0_3 = arith.constant 0 : index
    %c0_4 = arith.constant 0 : index
    %2 = vector.load %arg3[%c0_2, %c0_3, %c0_4] : memref<1x8x32xf32, #tpu.memory_space<vmem>>, vector<1x8x32xf32>
    %3 = vector.shape_cast %2 : vector<1x8x32xf32> to vector<8x32xf32>
    %4 = arith.addf %1, %3 : vector<8x32xf32>
    %c0_5 = arith.constant 0 : index
    %c0_6 = arith.constant 0 : index
    %5 = vector.load %arg4[%c0_5, %c0_6] : memref<8x32xf32, #tpu.memory_space<vmem>>, vector<8x32xf32>
    %6 = arith.addf %4, %5 : vector<8x32xf32>
    %cst = arith.constant dense<0.000000e+00> : vector<8xf32>
    %7 = vector.multi_reduction <add>, %6, %cst [1] : vector<8x32xf32> to vector<8xf32>
    %8 = vector.shape_cast %7 : vector<8xf32> to vector<8x1xf32>
    %cst_7 = arith.constant 3.200000e+01 : f32
    %9 = vector.broadcast %cst_7 : f32 to vector<8x1xf32>
    %10 = arith.divf %8, %9 : vector<8x1xf32>
    %11 = vector.broadcast %10 : vector<8x1xf32> to vector<8x32xf32>
    %12 = arith.subf %6, %11 : vector<8x32xf32>
    %13 = arith.mulf %12, %12 : vector<8x32xf32>
    %cst_8 = arith.constant dense<0.000000e+00> : vector<8xf32>
    %14 = vector.multi_reduction <add>, %13, %cst_8 [1] : vector<8x32xf32> to vector<8xf32>
    %15 = vector.shape_cast %14 : vector<8xf32> to vector<8x1xf32>
    %cst_9 = arith.constant 3.200000e+01 : f32
    %16 = vector.broadcast %cst_9 : f32 to vector<8x1xf32>
    %17 = arith.divf %15, %16 : vector<8x1xf32>
    %18 = vector.broadcast %10 : vector<8x1xf32> to vector<8x32xf32>
    %19 = arith.subf %6, %18 : vector<8x32xf32>
    %cst_10 = arith.constant 9.99999996E-13 : f32
    %20 = vector.broadcast %cst_10 : f32 to vector<8x1xf32>
    %21 = arith.addf %17, %20 : vector<8x1xf32>
    %22 = math.rsqrt %21 : vector<8x1xf32>
    %23 = vector.broadcast %22 : vector<8x1xf32> to vector<8x32xf32>
    %24 = arith.mulf %19, %23 : vector<8x32xf32>
    %c0_11 = arith.constant 0 : index
    %c0_12 = arith.constant 0 : index
    %25 = vector.load %arg5[%c0_11, %c0_12] : memref<1x32xf32, #tpu.memory_space<vmem>>, vector<1x32xf32>
    %26 = vector.broadcast %25 : vector<1x32xf32> to vector<8x32xf32>
    %27 = arith.mulf %24, %26 : vector<8x32xf32>
    %c0_13 = arith.constant 0 : index
    %c0_14 = arith.constant 0 : index
    %28 = vector.load %arg6[%c0_13, %c0_14] : memref<1x32xf32, #tpu.memory_space<vmem>>, vector<1x32xf32>
    %29 = vector.broadcast %28 : vector<1x32xf32> to vector<8x32xf32>
    %30 = arith.addf %27, %29 : vector<8x32xf32>
    %31 = arith.truncf %30 : vector<8x32xf32> to vector<8x32xbf16>
    %c0_15 = arith.constant 0 : index
    %c0_16 = arith.constant 0 : index
    %c0_17 = arith.constant 0 : index
    %32 = vector.load %arg7[%c0_15, %c0_16, %c0_17] : memref<1x8x32xbf16, #tpu.memory_space<vmem>>, vector<1x8x32xbf16>
    %33 = vector.shape_cast %32 : vector<1x8x32xbf16> to vector<8x32xbf16>
    %34 = vector.shape_cast %31 : vector<8x32xbf16> to vector<1x8x32xbf16>
    tpu.vector_store %arg7[%c0_15, %c0_16, %c0_17], %34 {strides = array<i32>} : memref<1x8x32xbf16, #tpu.memory_space<vmem>>, vector<1x8x32xbf16>,
    return
  }
  func.func @transform_0(%arg0: i32, %arg1: i32) -> (i32, i32, i32) {
    %c0_i32 = arith.constant 0 : i32
    %c0_i32_0 = arith.constant 0 : i32
    return %arg0, %arg1, %c0_i32 : i32, i32, i32
  }
  func.func @transform_1(%arg0: i32, %arg1: i32) -> (i32, i32, i32) {
    %c0_i32 = arith.constant 0 : i32
    %c0_i32_0 = arith.constant 0 : i32
    return %arg0, %arg1, %c0_i32 : i32, i32, i32
  }
  func.func @transform_2(%arg0: i32, %arg1: i32) -> (i32, i32) {
    %c0_i32 = arith.constant 0 : i32
    %c0_i32_0 = arith.constant 0 : i32
    return %arg1, %c0_i32 : i32, i32
  }
  func.func @transform_3(%arg0: i32, %arg1: i32) -> (i32, i32) {
    %c0_i32 = arith.constant 0 : i32
    %c0_i32_0 = arith.constant 0 : i32
    %c0_i32_1 = arith.constant 0 : i32
    return %c0_i32, %c0_i32_0 : i32, i32
  }
  func.func @transform_4(%arg0: i32, %arg1: i32) -> (i32, i32) {
    %c0_i32 = arith.constant 0 : i32
    %c0_i32_0 = arith.constant 0 : i32
    %c0_i32_1 = arith.constant 0 : i32
    return %c0_i32, %c0_i32_0 : i32, i32
  }
  func.func @transform_5(%arg0: i32, %arg1: i32) -> (i32, i32, i32) {
    %c0_i32 = arith.constant 0 : i32
    %c0_i32_0 = arith.constant 0 : i32
    return %arg0, %arg1, %c0_i32 : i32, i32, i32
  }
}

module attributes {stable_mosaic.version = 11 : i64} {
  func.func @_matmul_bias_kernel(%arg0: i32, %arg1: i32, %arg2: memref<16x32xbf16, #tpu.memory_space<vmem>>, %arg3: memref<32x96xbf16, #tpu.memory_space<vmem>>, %arg4: memref<1x96xf32, #tpu.memory_space<vmem>>, %arg5: memref<16x96xbf16, #tpu.memory_space<vmem>>) attributes {dimension_semantics = [#tpu.dimension_semantics<parallel>, #tpu.dimension_semantics<parallel>], iteration_bounds = array<i64: 1, 1>, scalar_prefetch = 0 : i64, scratch_operands = 0 : i64, tpu.core_type = #tpu.core_type<tc>, window_params = [{transform_indices = @transform_0, window_bounds = array<i64: 16, 32>}, {transform_indices = @transform_1, window_bounds = array<i64: 32, 96>}, {transform_indices = @transform_2, window_bounds = array<i64: 1, 96>}, {transform_indices = @transform_3, window_bounds = array<i64: 16, 96>}]} {
    %c0 = arith.constant 0 : index
    %c0_0 = arith.constant 0 : index
    %0 = vector.load %arg2[%c0, %c0_0] : memref<16x32xbf16, #tpu.memory_space<vmem>>, vector<16x32xbf16>
    %c0_1 = arith.constant 0 : index
    %c0_2 = arith.constant 0 : index
    %1 = vector.load %arg3[%c0_1, %c0_2] : memref<32x96xbf16, #tpu.memory_space<vmem>>, vector<32x96xbf16>
    %cst = arith.constant dense<0.000000e+00> : vector<16x96xf32>
    %2 = tpu.matmul %0, %1, %cst {dimension_numbers = #tpu.dot_dimension_numbers<[1], [0], [0], [1], [0, 0, 1, 1], [], []>} : vector<16x32xbf16>, vector<32x96xbf16>, vector<16x96xf32> -> vector<16x96xf32>
    %c0_3 = arith.constant 0 : index
    %c0_4 = arith.constant 0 : index
    %3 = vector.load %arg4[%c0_3, %c0_4] : memref<1x96xf32, #tpu.memory_space<vmem>>, vector<1x96xf32>
    %4 = vector.broadcast %3 : vector<1x96xf32> to vector<16x96xf32>
    %5 = arith.addf %2, %4 : vector<16x96xf32>
    %6 = arith.truncf %5 : vector<16x96xf32> to vector<16x96xbf16>
    %c0_5 = arith.constant 0 : index
    %c0_6 = arith.constant 0 : index
    %7 = vector.load %arg5[%c0_5, %c0_6] : memref<16x96xbf16, #tpu.memory_space<vmem>>, vector<16x96xbf16>
    tpu.vector_store %arg5[%c0_5, %c0_6], %6 {strides = array<i32>} : memref<16x96xbf16, #tpu.memory_space<vmem>>, vector<16x96xbf16>,
    return
  }
  func.func @transform_0(%arg0: i32, %arg1: i32) -> (i32, i32) {
    %c0_i32 = arith.constant 0 : i32
    %c0_i32_0 = arith.constant 0 : i32
    return %arg0, %c0_i32 : i32, i32
  }
  func.func @transform_1(%arg0: i32, %arg1: i32) -> (i32, i32) {
    %c0_i32 = arith.constant 0 : i32
    %c0_i32_0 = arith.constant 0 : i32
    return %c0_i32, %arg1 : i32, i32
  }
  func.func @transform_2(%arg0: i32, %arg1: i32) -> (i32, i32) {
    %c0_i32 = arith.constant 0 : i32
    %c0_i32_0 = arith.constant 0 : i32
    return %c0_i32, %arg1 : i32, i32
  }
  func.func @transform_3(%arg0: i32, %arg1: i32) -> (i32, i32) {
    %c0_i32 = arith.constant 0 : i32
    return %arg0, %arg1 : i32, i32
  }
}

module attributes {stable_mosaic.version = 11 : i64} {
  func.func @_matmul_bias_res_ln_kernel(%arg0: i32, %arg1: memref<16x32xbf16, #tpu.memory_space<vmem>>, %arg2: memref<32x32xbf16, #tpu.memory_space<vmem>>, %arg3: memref<1x32xf32, #tpu.memory_space<vmem>>, %arg4: memref<16x32xbf16, #tpu.memory_space<vmem>>, %arg5: memref<1x32xf32, #tpu.memory_space<vmem>>, %arg6: memref<1x32xf32, #tpu.memory_space<vmem>>, %arg7: memref<16x32xbf16, #tpu.memory_space<vmem>>) attributes {dimension_semantics = [#tpu.dimension_semantics<parallel>], iteration_bounds = array<i64: 1>, scalar_prefetch = 0 : i64, scratch_operands = 0 : i64, tpu.core_type = #tpu.core_type<tc>, window_params = [{transform_indices = @transform_0, window_bounds = array<i64: 16, 32>}, {pipeline_mode = #tpu.pipeline_mode<synchronous>, transform_indices = @transform_1, window_bounds = array<i64: 32, 32>}, {pipeline_mode = #tpu.pipeline_mode<synchronous>, transform_indices = @transform_2, window_bounds = array<i64: 1, 32>}, {transform_indices = @transform_3, window_bounds = array<i64: 16, 32>}, {pipeline_mode = #tpu.pipeline_mode<synchronous>, transform_indices = @transform_4, window_bounds = array<i64: 1, 32>}, {pipeline_mode = #tpu.pipeline_mode<synchronous>, transform_indices = @transform_5, window_bounds = array<i64: 1, 32>}, {transform_indices = @transform_6, window_bounds = array<i64: 16, 32>}]} {
    %c0 = arith.constant 0 : index
    %c0_0 = arith.constant 0 : index
    %0 = vector.load %arg1[%c0, %c0_0] : memref<16x32xbf16, #tpu.memory_space<vmem>>, vector<16x32xbf16>
    %c0_1 = arith.constant 0 : index
    %c0_2 = arith.constant 0 : index
    %1 = vector.load %arg2[%c0_1, %c0_2] : memref<32x32xbf16, #tpu.memory_space<vmem>>, vector<32x32xbf16>
    %cst = arith.constant dense<0.000000e+00> : vector<16x32xf32>
    %2 = tpu.matmul %0, %1, %cst {dimension_numbers = #tpu.dot_dimension_numbers<[1], [0], [0], [1], [0, 0, 1, 1], [], []>} : vector<16x32xbf16>, vector<32x32xbf16>, vector<16x32xf32> -> vector<16x32xf32>
    %c0_3 = arith.constant 0 : index
    %c0_4 = arith.constant 0 : index
    %3 = vector.load %arg3[%c0_3, %c0_4] : memref<1x32xf32, #tpu.memory_space<vmem>>, vector<1x32xf32>
    %4 = vector.broadcast %3 : vector<1x32xf32> to vector<16x32xf32>
    %5 = arith.addf %2, %4 : vector<16x32xf32>
    %c0_5 = arith.constant 0 : index
    %c0_6 = arith.constant 0 : index
    %6 = vector.load %arg4[%c0_5, %c0_6] : memref<16x32xbf16, #tpu.memory_space<vmem>>, vector<16x32xbf16>
    %7 = arith.extf %6 : vector<16x32xbf16> to vector<16x32xf32>
    %8 = arith.addf %5, %7 : vector<16x32xf32>
    %cst_7 = arith.constant dense<0.000000e+00> : vector<16xf32>
    %9 = vector.multi_reduction <add>, %8, %cst_7 [1] : vector<16x32xf32> to vector<16xf32>
    %10 = vector.shape_cast %9 : vector<16xf32> to vector<16x1xf32>
    %cst_8 = arith.constant 3.200000e+01 : f32
    %11 = vector.broadcast %cst_8 : f32 to vector<16x1xf32>
    %12 = arith.divf %10, %11 : vector<16x1xf32>
    %13 = vector.broadcast %12 : vector<16x1xf32> to vector<16x32xf32>
    %14 = arith.subf %8, %13 : vector<16x32xf32>
    %15 = arith.mulf %14, %14 : vector<16x32xf32>
    %cst_9 = arith.constant dense<0.000000e+00> : vector<16xf32>
    %16 = vector.multi_reduction <add>, %15, %cst_9 [1] : vector<16x32xf32> to vector<16xf32>
    %17 = vector.shape_cast %16 : vector<16xf32> to vector<16x1xf32>
    %cst_10 = arith.constant 3.200000e+01 : f32
    %18 = vector.broadcast %cst_10 : f32 to vector<16x1xf32>
    %19 = arith.divf %17, %18 : vector<16x1xf32>
    %20 = vector.broadcast %12 : vector<16x1xf32> to vector<16x32xf32>
    %21 = arith.subf %8, %20 : vector<16x32xf32>
    %cst_11 = arith.constant 9.99999996E-13 : f32
    %22 = vector.broadcast %cst_11 : f32 to vector<16x1xf32>
    %23 = arith.addf %19, %22 : vector<16x1xf32>
    %24 = math.rsqrt %23 : vector<16x1xf32>
    %25 = vector.broadcast %24 : vector<16x1xf32> to vector<16x32xf32>
    %26 = arith.mulf %21, %25 : vector<16x32xf32>
    %c0_12 = arith.constant 0 : index
    %c0_13 = arith.constant 0 : index
    %27 = vector.load %arg5[%c0_12, %c0_13] : memref<1x32xf32, #tpu.memory_space<vmem>>, vector<1x32xf32>
    %28 = vector.broadcast %27 : vector<1x32xf32> to vector<16x32xf32>
    %29 = arith.mulf %26, %28 : vector<16x32xf32>
    %c0_14 = arith.constant 0 : index
    %c0_15 = arith.constant 0 : index
    %30 = vector.load %arg6[%c0_14, %c0_15] : memref<1x32xf32, #tpu.memory_space<vmem>>, vector<1x32xf32>
    %31 = vector.broadcast %30 : vector<1x32xf32> to vector<16x32xf32>
    %32 = arith.addf %29, %31 : vector<16x32xf32>
    %33 = arith.truncf %32 : vector<16x32xf32> to vector<16x32xbf16>
    %c0_16 = arith.constant 0 : index
    %c0_17 = arith.constant 0 : index
    %34 = vector.load %arg7[%c0_16, %c0_17] : memref<16x32xbf16, #tpu.memory_space<vmem>>, vector<16x32xbf16>
    tpu.vector_store %arg7[%c0_16, %c0_17], %33 {strides = array<i32>} : memref<16x32xbf16, #tpu.memory_space<vmem>>, vector<16x32xbf16>,
    return
  }
  func.func @transform_0(%arg0: i32) -> (i32, i32) {
    %c0_i32 = arith.constant 0 : i32
    %c0_i32_0 = arith.constant 0 : i32
    return %arg0, %c0_i32 : i32, i32
  }
  func.func @transform_1(%arg0: i32) -> (i32, i32) {
    %c0_i32 = arith.constant 0 : i32
    %c0_i32_0 = arith.constant 0 : i32
    %c0_i32_1 = arith.constant 0 : i32
    return %c0_i32, %c0_i32_0 : i32, i32
  }
  func.func @transform_2(%arg0: i32) -> (i32, i32) {
    %c0_i32 = arith.constant 0 : i32
    %c0_i32_0 = arith.constant 0 : i32
    %c0_i32_1 = arith.constant 0 : i32
    return %c0_i32, %c0_i32_0 : i32, i32
  }
  func.func @transform_3(%arg0: i32) -> (i32, i32) {
    %c0_i32 = arith.constant 0 : i32
    %c0_i32_0 = arith.constant 0 : i32
    return %arg0, %c0_i32 : i32, i32
  }
  func.func @transform_4(%arg0: i32) -> (i32, i32) {
    %c0_i32 = arith.constant 0 : i32
    %c0_i32_0 = arith.constant 0 : i32
    %c0_i32_1 = arith.constant 0 : i32
    return %c0_i32, %c0_i32_0 : i32, i32
  }
  func.func @transform_5(%arg0: i32) -> (i32, i32) {
    %c0_i32 = arith.constant 0 : i32
    %c0_i32_0 = arith.constant 0 : i32
    %c0_i32_1 = arith.constant 0 : i32
    return %c0_i32, %c0_i32_0 : i32, i32
  }
  func.func @transform_6(%arg0: i32) -> (i32, i32) {
    %c0_i32 = arith.constant 0 : i32
    %c0_i32_0 = arith.constant 0 : i32
    return %arg0, %c0_i32 : i32, i32
  }
}

module attributes {stable_mosaic.version = 11 : i64} {
  func.func @_attn_packed_kernel(%arg0: i32, %arg1: memref<1x8x96xbf16, #tpu.memory_space<vmem>>, %arg2: memref<1x1x8xf32, #tpu.memory_space<vmem>>, %arg3: memref<1x8x32xbf16, #tpu.memory_space<vmem>>) attributes {dimension_semantics = [#tpu.dimension_semantics<parallel>], iteration_bounds = array<i64: 2>, scalar_prefetch = 0 : i64, scratch_operands = 0 : i64, tpu.core_type = #tpu.core_type<tc>, window_params = [{transform_indices = @transform_0, window_bounds = array<i64: 1, 8, 96>}, {transform_indices = @transform_1, window_bounds = array<i64: 1, 1, 8>}, {transform_indices = @transform_2, window_bounds = array<i64: 1, 8, 32>}]} {
    %c0 = arith.constant 0 : index
    %c0_0 = arith.constant 0 : index
    %c0_1 = arith.constant 0 : index
    %0 = vector.load %arg1[%c0, %c0_0, %c0_1] : memref<1x8x96xbf16, #tpu.memory_space<vmem>>, vector<1x8x96xbf16>
    %1 = vector.shape_cast %0 : vector<1x8x96xbf16> to vector<8x96xbf16>
    %c0_2 = arith.constant 0 : index
    %c0_3 = arith.constant 0 : index
    %c0_4 = arith.constant 0 : index
    %2 = vector.load %arg2[%c0_2, %c0_3, %c0_4] : memref<1x1x8xf32, #tpu.memory_space<vmem>>, vector<1x1x8xf32>
    %3 = vector.shape_cast %2 : vector<1x1x8xf32> to vector<1x8xf32>
    %4 = vector.extract_strided_slice %1 {offsets = [0, 0], sizes = [8, 8], strides = [1, 1]} : vector<8x96xbf16> to vector<8x8xbf16>
    %5 = vector.extract_strided_slice %1 {offsets = [0, 32], sizes = [8, 8], strides = [1, 1]} : vector<8x96xbf16> to vector<8x8xbf16>
    %6 = vector.extract_strided_slice %1 {offsets = [0, 64], sizes = [8, 8], strides = [1, 1]} : vector<8x96xbf16> to vector<8x8xbf16>
    %cst = arith.constant 3.535160e-01 : bf16
    %7 = vector.broadcast %cst : bf16 to vector<8x8xbf16>
    %8 = arith.mulf %4, %7 : vector<8x8xbf16>
    %cst_5 = arith.constant dense<0.000000e+00> : vector<8x8xf32>
    %9 = tpu.matmul %8, %5, %cst_5 {dimension_numbers = #tpu.dot_dimension_numbers<[1], [1], [0], [0], [0, 0, 1, 0], [], []>} : vector<8x8xbf16>, vector<8x8xbf16>, vector<8x8xf32> -> vector<8x8xf32>
    %10 = vector.broadcast %3 : vector<1x8xf32> to vector<8x8xf32>
    %11 = arith.addf %9, %10 : vector<8x8xf32>
    %cst_6 = arith.constant dense<0xFF800000> : vector<8xf32>
    %12 = vector.multi_reduction <maximumf>, %11, %cst_6 [1] : vector<8x8xf32> to vector<8xf32>
    %13 = vector.shape_cast %12 : vector<8xf32> to vector<8x1xf32>
    %14 = vector.broadcast %13 : vector<8x1xf32> to vector<8x8xf32>
    %15 = arith.subf %11, %14 : vector<8x8xf32>
    %16 = math.exp %15 : vector<8x8xf32>
    %cst_7 = arith.constant dense<0.000000e+00> : vector<8xf32>
    %17 = vector.multi_reduction <add>, %16, %cst_7 [1] : vector<8x8xf32> to vector<8xf32>
    %18 = vector.shape_cast %17 : vector<8xf32> to vector<8x1xf32>
    %19 = tpu.reciprocal %18 {approx = true} : vector<8x1xf32> -> vector<8x1xf32>
    %20 = vector.broadcast %19 : vector<8x1xf32> to vector<8x8xf32>
    %21 = arith.mulf %16, %20 : vector<8x8xf32>
    %22 = arith.truncf %21 : vector<8x8xf32> to vector<8x8xbf16>
    %cst_8 = arith.constant dense<0.000000e+00> : vector<8x8xf32>
    %23 = tpu.matmul %22, %6, %cst_8 {dimension_numbers = #tpu.dot_dimension_numbers<[1], [0], [0], [1], [0, 0, 1, 1], [], []>} : vector<8x8xbf16>, vector<8x8xbf16>, vector<8x8xf32> -> vector<8x8xf32>
    %24 = arith.truncf %23 : vector<8x8xf32> to vector<8x8xbf16>
    %c0_9 = arith.constant 0 : index
    %c0_10 = arith.constant 0 : index
    %c0_11 = arith.constant 0 : index
    %25 = vector.load %arg3[%c0_9, %c0_10, %c0_11] : memref<1x8x32xbf16, #tpu.memory_space<vmem>>, vector<1x8x8xbf16>
    %26 = vector.shape_cast %25 : vector<1x8x8xbf16> to vector<8x8xbf16>
    %27 = vector.shape_cast %24 : vector<8x8xbf16> to vector<1x8x8xbf16>
    tpu.vector_store %arg3[%c0_9, %c0_10, %c0_11], %27 {strides = array<i32>} : memref<1x8x32xbf16, #tpu.memory_space<vmem>>, vector<1x8x8xbf16>,
    %28 = vector.extract_strided_slice %1 {offsets = [0, 8], sizes = [8, 8], strides = [1, 1]} : vector<8x96xbf16> to vector<8x8xbf16>
    %29 = vector.extract_strided_slice %1 {offsets = [0, 40], sizes = [8, 8], strides = [1, 1]} : vector<8x96xbf16> to vector<8x8xbf16>
    %30 = vector.extract_strided_slice %1 {offsets = [0, 72], sizes = [8, 8], strides = [1, 1]} : vector<8x96xbf16> to vector<8x8xbf16>
    %cst_12 = arith.constant 3.535160e-01 : bf16
    %31 = vector.broadcast %cst_12 : bf16 to vector<8x8xbf16>
    %32 = arith.mulf %28, %31 : vector<8x8xbf16>
    %cst_13 = arith.constant dense<0.000000e+00> : vector<8x8xf32>
    %33 = tpu.matmul %32, %29, %cst_13 {dimension_numbers = #tpu.dot_dimension_numbers<[1], [1], [0], [0], [0, 0, 1, 0], [], []>} : vector<8x8xbf16>, vector<8x8xbf16>, vector<8x8xf32> -> vector<8x8xf32>
    %34 = vector.broadcast %3 : vector<1x8xf32> to vector<8x8xf32>
    %35 = arith.addf %33, %34 : vector<8x8xf32>
    %cst_14 = arith.constant dense<0xFF800000> : vector<8xf32>
    %36 = vector.multi_reduction <maximumf>, %35, %cst_14 [1] : vector<8x8xf32> to vector<8xf32>
    %37 = vector.shape_cast %36 : vector<8xf32> to vector<8x1xf32>
    %38 = vector.broadcast %37 : vector<8x1xf32> to vector<8x8xf32>
    %39 = arith.subf %35, %38 : vector<8x8xf32>
    %40 = math.exp %39 : vector<8x8xf32>
    %cst_15 = arith.constant dense<0.000000e+00> : vector<8xf32>
    %41 = vector.multi_reduction <add>, %40, %cst_15 [1] : vector<8x8xf32> to vector<8xf32>
    %42 = vector.shape_cast %41 : vector<8xf32> to vector<8x1xf32>
    %43 = tpu.reciprocal %42 {approx = true} : vector<8x1xf32> -> vector<8x1xf32>
    %44 = vector.broadcast %43 : vector<8x1xf32> to vector<8x8xf32>
    %45 = arith.mulf %40, %44 : vector<8x8xf32>
    %46 = arith.truncf %45 : vector<8x8xf32> to vector<8x8xbf16>
    %cst_16 = arith.constant dense<0.000000e+00> : vector<8x8xf32>
    %47 = tpu.matmul %46, %30, %cst_16 {dimension_numbers = #tpu.dot_dimension_numbers<[1], [0], [0], [1], [0, 0, 1, 1], [], []>} : vector<8x8xbf16>, vector<8x8xbf16>, vector<8x8xf32> -> vector<8x8xf32>
    %48 = arith.truncf %47 : vector<8x8xf32> to vector<8x8xbf16>
    %c0_17 = arith.constant 0 : index
    %c0_18 = arith.constant 0 : index
    %c8 = arith.constant 8 : index
    %49 = vector.load %arg3[%c0_17, %c0_18, %c8] : memref<1x8x32xbf16, #tpu.memory_space<vmem>>, vector<1x8x8xbf16>
    %50 = vector.shape_cast %49 : vector<1x8x8xbf16> to vector<8x8xbf16>
    %51 = vector.shape_cast %48 : vector<8x8xbf16> to vector<1x8x8xbf16>
    tpu.vector_store %arg3[%c0_17, %c0_18, %c8], %51 {strides = array<i32>} : memref<1x8x32xbf16, #tpu.memory_space<vmem>>, vector<1x8x8xbf16>,
    %52 = vector.extract_strided_slice %1 {offsets = [0, 16], sizes = [8, 8], strides = [1, 1]} : vector<8x96xbf16> to vector<8x8xbf16>
    %53 = vector.extract_strided_slice %1 {offsets = [0, 48], sizes = [8, 8], strides = [1, 1]} : vector<8x96xbf16> to vector<8x8xbf16>
    %54 = vector.extract_strided_slice %1 {offsets = [0, 80], sizes = [8, 8], strides = [1, 1]} : vector<8x96xbf16> to vector<8x8xbf16>
    %cst_19 = arith.constant 3.535160e-01 : bf16
    %55 = vector.broadcast %cst_19 : bf16 to vector<8x8xbf16>
    %56 = arith.mulf %52, %55 : vector<8x8xbf16>
    %cst_20 = arith.constant dense<0.000000e+00> : vector<8x8xf32>
    %57 = tpu.matmul %56, %53, %cst_20 {dimension_numbers = #tpu.dot_dimension_numbers<[1], [1], [0], [0], [0, 0, 1, 0], [], []>} : vector<8x8xbf16>, vector<8x8xbf16>, vector<8x8xf32> -> vector<8x8xf32>
    %58 = vector.broadcast %3 : vector<1x8xf32> to vector<8x8xf32>
    %59 = arith.addf %57, %58 : vector<8x8xf32>
    %cst_21 = arith.constant dense<0xFF800000> : vector<8xf32>
    %60 = vector.multi_reduction <maximumf>, %59, %cst_21 [1] : vector<8x8xf32> to vector<8xf32>
    %61 = vector.shape_cast %60 : vector<8xf32> to vector<8x1xf32>
    %62 = vector.broadcast %61 : vector<8x1xf32> to vector<8x8xf32>
    %63 = arith.subf %59, %62 : vector<8x8xf32>
    %64 = math.exp %63 : vector<8x8xf32>
    %cst_22 = arith.constant dense<0.000000e+00> : vector<8xf32>
    %65 = vector.multi_reduction <add>, %64, %cst_22 [1] : vector<8x8xf32> to vector<8xf32>
    %66 = vector.shape_cast %65 : vector<8xf32> to vector<8x1xf32>
    %67 = tpu.reciprocal %66 {approx = true} : vector<8x1xf32> -> vector<8x1xf32>
    %68 = vector.broadcast %67 : vector<8x1xf32> to vector<8x8xf32>
    %69 = arith.mulf %64, %68 : vector<8x8xf32>
    %70 = arith.truncf %69 : vector<8x8xf32> to vector<8x8xbf16>
    %cst_23 = arith.constant dense<0.000000e+00> : vector<8x8xf32>
    %71 = tpu.matmul %70, %54, %cst_23 {dimension_numbers = #tpu.dot_dimension_numbers<[1], [0], [0], [1], [0, 0, 1, 1], [], []>} : vector<8x8xbf16>, vector<8x8xbf16>, vector<8x8xf32> -> vector<8x8xf32>
    %72 = arith.truncf %71 : vector<8x8xf32> to vector<8x8xbf16>
    %c0_24 = arith.constant 0 : index
    %c0_25 = arith.constant 0 : index
    %c16 = arith.constant 16 : index
    %73 = vector.load %arg3[%c0_24, %c0_25, %c16] : memref<1x8x32xbf16, #tpu.memory_space<vmem>>, vector<1x8x8xbf16>
    %74 = vector.shape_cast %73 : vector<1x8x8xbf16> to vector<8x8xbf16>
    %75 = vector.shape_cast %72 : vector<8x8xbf16> to vector<1x8x8xbf16>
    tpu.vector_store %arg3[%c0_24, %c0_25, %c16], %75 {strides = array<i32>} : memref<1x8x32xbf16, #tpu.memory_space<vmem>>, vector<1x8x8xbf16>,
    %76 = vector.extract_strided_slice %1 {offsets = [0, 24], sizes = [8, 8], strides = [1, 1]} : vector<8x96xbf16> to vector<8x8xbf16>
    %77 = vector.extract_strided_slice %1 {offsets = [0, 56], sizes = [8, 8], strides = [1, 1]} : vector<8x96xbf16> to vector<8x8xbf16>
    %78 = vector.extract_strided_slice %1 {offsets = [0, 88], sizes = [8, 8], strides = [1, 1]} : vector<8x96xbf16> to vector<8x8xbf16>
    %cst_26 = arith.constant 3.535160e-01 : bf16
    %79 = vector.broadcast %cst_26 : bf16 to vector<8x8xbf16>
    %80 = arith.mulf %76, %79 : vector<8x8xbf16>
    %cst_27 = arith.constant dense<0.000000e+00> : vector<8x8xf32>
    %81 = tpu.matmul %80, %77, %cst_27 {dimension_numbers = #tpu.dot_dimension_numbers<[1], [1], [0], [0], [0, 0, 1, 0], [], []>} : vector<8x8xbf16>, vector<8x8xbf16>, vector<8x8xf32> -> vector<8x8xf32>
    %82 = vector.broadcast %3 : vector<1x8xf32> to vector<8x8xf32>
    %83 = arith.addf %81, %82 : vector<8x8xf32>
    %cst_28 = arith.constant dense<0xFF800000> : vector<8xf32>
    %84 = vector.multi_reduction <maximumf>, %83, %cst_28 [1] : vector<8x8xf32> to vector<8xf32>
    %85 = vector.shape_cast %84 : vector<8xf32> to vector<8x1xf32>
    %86 = vector.broadcast %85 : vector<8x1xf32> to vector<8x8xf32>
    %87 = arith.subf %83, %86 : vector<8x8xf32>
    %88 = math.exp %87 : vector<8x8xf32>
    %cst_29 = arith.constant dense<0.000000e+00> : vector<8xf32>
    %89 = vector.multi_reduction <add>, %88, %cst_29 [1] : vector<8x8xf32> to vector<8xf32>
    %90 = vector.shape_cast %89 : vector<8xf32> to vector<8x1xf32>
    %91 = tpu.reciprocal %90 {approx = true} : vector<8x1xf32> -> vector<8x1xf32>
    %92 = vector.broadcast %91 : vector<8x1xf32> to vector<8x8xf32>
    %93 = arith.mulf %88, %92 : vector<8x8xf32>
    %94 = arith.truncf %93 : vector<8x8xf32> to vector<8x8xbf16>
    %cst_30 = arith.constant dense<0.000000e+00> : vector<8x8xf32>
    %95 = tpu.matmul %94, %78, %cst_30 {dimension_numbers = #tpu.dot_dimension_numbers<[1], [0], [0], [1], [0, 0, 1, 1], [], []>} : vector<8x8xbf16>, vector<8x8xbf16>, vector<8x8xf32> -> vector<8x8xf32>
    %96 = arith.truncf %95 : vector<8x8xf32> to vector<8x8xbf16>
    %c0_31 = arith.constant 0 : index
    %c0_32 = arith.constant 0 : index
    %c24 = arith.constant 24 : index
    %97 = vector.load %arg3[%c0_31, %c0_32, %c24] : memref<1x8x32xbf16, #tpu.memory_space<vmem>>, vector<1x8x8xbf16>
    %98 = vector.shape_cast %97 : vector<1x8x8xbf16> to vector<8x8xbf16>
    %99 = vector.shape_cast %96 : vector<8x8xbf16> to vector<1x8x8xbf16>
    tpu.vector_store %arg3[%c0_31, %c0_32, %c24], %99 {strides = array<i32>} : memref<1x8x32xbf16, #tpu.memory_space<vmem>>, vector<1x8x8xbf16>,
    return
  }
  func.func @transform_0(%arg0: i32) -> (i32, i32, i32) {
    %c0_i32 = arith.constant 0 : i32
    %c0_i32_0 = arith.constant 0 : i32
    %c0_i32_1 = arith.constant 0 : i32
    return %arg0, %c0_i32, %c0_i32_0 : i32, i32, i32
  }
  func.func @transform_1(%arg0: i32) -> (i32, i32, i32) {
    %c0_i32 = arith.constant 0 : i32
    %c0_i32_0 = arith.constant 0 : i32
    %c0_i32_1 = arith.constant 0 : i32
    return %arg0, %c0_i32, %c0_i32_0 : i32, i32, i32
  }
  func.func @transform_2(%arg0: i32) -> (i32, i32, i32) {
    %c0_i32 = arith.constant 0 : i32
    %c0_i32_0 = arith.constant 0 : i32
    %c0_i32_1 = arith.constant 0 : i32
    return %arg0, %c0_i32, %c0_i32_0 : i32, i32, i32
  }
}

module attributes {stable_mosaic.version = 11 : i64} {
  func.func @_matmul_bias_kernel(%arg0: i32, %arg1: i32, %arg2: memref<16x32xbf16, #tpu.memory_space<vmem>>, %arg3: memref<32x64xbf16, #tpu.memory_space<vmem>>, %arg4: memref<1x64xf32, #tpu.memory_space<vmem>>, %arg5: memref<16x64xbf16, #tpu.memory_space<vmem>>) attributes {dimension_semantics = [#tpu.dimension_semantics<parallel>, #tpu.dimension_semantics<parallel>], iteration_bounds = array<i64: 1, 1>, scalar_prefetch = 0 : i64, scratch_operands = 0 : i64, tpu.core_type = #tpu.core_type<tc>, window_params = [{transform_indices = @transform_0, window_bounds = array<i64: 16, 32>}, {transform_indices = @transform_1, window_bounds = array<i64: 32, 64>}, {transform_indices = @transform_2, window_bounds = array<i64: 1, 64>}, {transform_indices = @transform_3, window_bounds = array<i64: 16, 64>}]} {
    %c0 = arith.constant 0 : index
    %c0_0 = arith.constant 0 : index
    %0 = vector.load %arg2[%c0, %c0_0] : memref<16x32xbf16, #tpu.memory_space<vmem>>, vector<16x32xbf16>
    %c0_1 = arith.constant 0 : index
    %c0_2 = arith.constant 0 : index
    %1 = vector.load %arg3[%c0_1, %c0_2] : memref<32x64xbf16, #tpu.memory_space<vmem>>, vector<32x64xbf16>
    %cst = arith.constant dense<0.000000e+00> : vector<16x64xf32>
    %2 = tpu.matmul %0, %1, %cst {dimension_numbers = #tpu.dot_dimension_numbers<[1], [0], [0], [1], [0, 0, 1, 1], [], []>} : vector<16x32xbf16>, vector<32x64xbf16>, vector<16x64xf32> -> vector<16x64xf32>
    %c0_3 = arith.constant 0 : index
    %c0_4 = arith.constant 0 : index
    %3 = vector.load %arg4[%c0_3, %c0_4] : memref<1x64xf32, #tpu.memory_space<vmem>>, vector<1x64xf32>
    %4 = vector.broadcast %3 : vector<1x64xf32> to vector<16x64xf32>
    %5 = arith.addf %2, %4 : vector<16x64xf32>
    %cst_5 = arith.constant 5.000000e-01 : f32
    %6 = vector.broadcast %cst_5 : f32 to vector<16x64xf32>
    %7 = arith.mulf %6, %5 : vector<16x64xf32>
    %cst_6 = arith.constant 0.707106769 : f32
    %8 = vector.broadcast %cst_6 : f32 to vector<16x64xf32>
    %9 = arith.mulf %5, %8 : vector<16x64xf32>
    %10 = math.erf %9 : vector<16x64xf32>
    %cst_7 = arith.constant 1.000000e+00 : f32
    %11 = vector.broadcast %cst_7 : f32 to vector<16x64xf32>
    %12 = arith.addf %11, %10 : vector<16x64xf32>
    %13 = arith.mulf %7, %12 : vector<16x64xf32>
    %14 = arith.truncf %13 : vector<16x64xf32> to vector<16x64xbf16>
    %c0_8 = arith.constant 0 : index
    %c0_9 = arith.constant 0 : index
    %15 = vector.load %arg5[%c0_8, %c0_9] : memref<16x64xbf16, #tpu.memory_space<vmem>>, vector<16x64xbf16>
    tpu.vector_store %arg5[%c0_8, %c0_9], %14 {strides = array<i32>} : memref<16x64xbf16, #tpu.memory_space<vmem>>, vector<16x64xbf16>,
    return
  }
  func.func @transform_0(%arg0: i32, %arg1: i32) -> (i32, i32) {
    %c0_i32 = arith.constant 0 : i32
    %c0_i32_0 = arith.constant 0 : i32
    return %arg0, %c0_i32 : i32, i32
  }
  func.func @transform_1(%arg0: i32, %arg1: i32) -> (i32, i32) {
    %c0_i32 = arith.constant 0 : i32
    %c0_i32_0 = arith.constant 0 : i32
    return %c0_i32, %arg1 : i32, i32
  }
  func.func @transform_2(%arg0: i32, %arg1: i32) -> (i32, i32) {
    %c0_i32 = arith.constant 0 : i32
    %c0_i32_0 = arith.constant 0 : i32
    return %c0_i32, %arg1 : i32, i32
  }
  func.func @transform_3(%arg0: i32, %arg1: i32) -> (i32, i32) {
    %c0_i32 = arith.constant 0 : i32
    return %arg0, %arg1 : i32, i32
  }
}

module attributes {stable_mosaic.version = 11 : i64} {
  func.func @_matmul_bias_res_ln_kernel(%arg0: i32, %arg1: memref<16x64xbf16, #tpu.memory_space<vmem>>, %arg2: memref<64x32xbf16, #tpu.memory_space<vmem>>, %arg3: memref<1x32xf32, #tpu.memory_space<vmem>>, %arg4: memref<16x32xbf16, #tpu.memory_space<vmem>>, %arg5: memref<1x32xf32, #tpu.memory_space<vmem>>, %arg6: memref<1x32xf32, #tpu.memory_space<vmem>>, %arg7: memref<16x32xbf16, #tpu.memory_space<vmem>>) attributes {dimension_semantics = [#tpu.dimension_semantics<parallel>], iteration_bounds = array<i64: 1>, scalar_prefetch = 0 : i64, scratch_operands = 0 : i64, tpu.core_type = #tpu.core_type<tc>, window_params = [{transform_indices = @transform_0, window_bounds = array<i64: 16, 64>}, {pipeline_mode = #tpu.pipeline_mode<synchronous>, transform_indices = @transform_1, window_bounds = array<i64: 64, 32>}, {pipeline_mode = #tpu.pipeline_mode<synchronous>, transform_indices = @transform_2, window_bounds = array<i64: 1, 32>}, {transform_indices = @transform_3, window_bounds = array<i64: 16, 32>}, {pipeline_mode = #tpu.pipeline_mode<synchronous>, transform_indices = @transform_4, window_bounds = array<i64: 1, 32>}, {pipeline_mode = #tpu.pipeline_mode<synchronous>, transform_indices = @transform_5, window_bounds = array<i64: 1, 32>}, {transform_indices = @transform_6, window_bounds = array<i64: 16, 32>}]} {
    %c0 = arith.constant 0 : index
    %c0_0 = arith.constant 0 : index
    %0 = vector.load %arg1[%c0, %c0_0] : memref<16x64xbf16, #tpu.memory_space<vmem>>, vector<16x64xbf16>
    %c0_1 = arith.constant 0 : index
    %c0_2 = arith.constant 0 : index
    %1 = vector.load %arg2[%c0_1, %c0_2] : memref<64x32xbf16, #tpu.memory_space<vmem>>, vector<64x32xbf16>
    %cst = arith.constant dense<0.000000e+00> : vector<16x32xf32>
    %2 = tpu.matmul %0, %1, %cst {dimension_numbers = #tpu.dot_dimension_numbers<[1], [0], [0], [1], [0, 0, 1, 1], [], []>} : vector<16x64xbf16>, vector<64x32xbf16>, vector<16x32xf32> -> vector<16x32xf32>
    %c0_3 = arith.constant 0 : index
    %c0_4 = arith.constant 0 : index
    %3 = vector.load %arg3[%c0_3, %c0_4] : memref<1x32xf32, #tpu.memory_space<vmem>>, vector<1x32xf32>
    %4 = vector.broadcast %3 : vector<1x32xf32> to vector<16x32xf32>
    %5 = arith.addf %2, %4 : vector<16x32xf32>
    %c0_5 = arith.constant 0 : index
    %c0_6 = arith.constant 0 : index
    %6 = vector.load %arg4[%c0_5, %c0_6] : memref<16x32xbf16, #tpu.memory_space<vmem>>, vector<16x32xbf16>
    %7 = arith.extf %6 : vector<16x32xbf16> to vector<16x32xf32>
    %8 = arith.addf %5, %7 : vector<16x32xf32>
    %cst_7 = arith.constant dense<0.000000e+00> : vector<16xf32>
    %9 = vector.multi_reduction <add>, %8, %cst_7 [1] : vector<16x32xf32> to vector<16xf32>
    %10 = vector.shape_cast %9 : vector<16xf32> to vector<16x1xf32>
    %cst_8 = arith.constant 3.200000e+01 : f32
    %11 = vector.broadcast %cst_8 : f32 to vector<16x1xf32>
    %12 = arith.divf %10, %11 : vector<16x1xf32>
    %13 = vector.broadcast %12 : vector<16x1xf32> to vector<16x32xf32>
    %14 = arith.subf %8, %13 : vector<16x32xf32>
    %15 = arith.mulf %14, %14 : vector<16x32xf32>
    %cst_9 = arith.constant dense<0.000000e+00> : vector<16xf32>
    %16 = vector.multi_reduction <add>, %15, %cst_9 [1] : vector<16x32xf32> to vector<16xf32>
    %17 = vector.shape_cast %16 : vector<16xf32> to vector<16x1xf32>
    %cst_10 = arith.constant 3.200000e+01 : f32
    %18 = vector.broadcast %cst_10 : f32 to vector<16x1xf32>
    %19 = arith.divf %17, %18 : vector<16x1xf32>
    %20 = vector.broadcast %12 : vector<16x1xf32> to vector<16x32xf32>
    %21 = arith.subf %8, %20 : vector<16x32xf32>
    %cst_11 = arith.constant 9.99999996E-13 : f32
    %22 = vector.broadcast %cst_11 : f32 to vector<16x1xf32>
    %23 = arith.addf %19, %22 : vector<16x1xf32>
    %24 = math.rsqrt %23 : vector<16x1xf32>
    %25 = vector.broadcast %24 : vector<16x1xf32> to vector<16x32xf32>
    %26 = arith.mulf %21, %25 : vector<16x32xf32>
    %c0_12 = arith.constant 0 : index
    %c0_13 = arith.constant 0 : index
    %27 = vector.load %arg5[%c0_12, %c0_13] : memref<1x32xf32, #tpu.memory_space<vmem>>, vector<1x32xf32>
    %28 = vector.broadcast %27 : vector<1x32xf32> to vector<16x32xf32>
    %29 = arith.mulf %26, %28 : vector<16x32xf32>
    %c0_14 = arith.constant 0 : index
    %c0_15 = arith.constant 0 : index
    %30 = vector.load %arg6[%c0_14, %c0_15] : memref<1x32xf32, #tpu.memory_space<vmem>>, vector<1x32xf32>
    %31 = vector.broadcast %30 : vector<1x32xf32> to vector<16x32xf32>
    %32 = arith.addf %29, %31 : vector<16x32xf32>
    %33 = arith.truncf %32 : vector<16x32xf32> to vector<16x32xbf16>
    %c0_16 = arith.constant 0 : index
    %c0_17 = arith.constant 0 : index
    %34 = vector.load %arg7[%c0_16, %c0_17] : memref<16x32xbf16, #tpu.memory_space<vmem>>, vector<16x32xbf16>
    tpu.vector_store %arg7[%c0_16, %c0_17], %33 {strides = array<i32>} : memref<16x32xbf16, #tpu.memory_space<vmem>>, vector<16x32xbf16>,
    return
  }
  func.func @transform_0(%arg0: i32) -> (i32, i32) {
    %c0_i32 = arith.constant 0 : i32
    %c0_i32_0 = arith.constant 0 : i32
    return %arg0, %c0_i32 : i32, i32
  }
  func.func @transform_1(%arg0: i32) -> (i32, i32) {
    %c0_i32 = arith.constant 0 : i32
    %c0_i32_0 = arith.constant 0 : i32
    %c0_i32_1 = arith.constant 0 : i32
    return %c0_i32, %c0_i32_0 : i32, i32
  }
  func.func @transform_2(%arg0: i32) -> (i32, i32) {
    %c0_i32 = arith.constant 0 : i32
    %c0_i32_0 = arith.constant 0 : i32
    %c0_i32_1 = arith.constant 0 : i32
    return %c0_i32, %c0_i32_0 : i32, i32
  }
  func.func @transform_3(%arg0: i32) -> (i32, i32) {
    %c0_i32 = arith.constant 0 : i32
    %c0_i32_0 = arith.constant 0 : i32
    return %arg0, %c0_i32 : i32, i32
  }
  func.func @transform_4(%arg0: i32) -> (i32, i32) {
    %c0_i32 = arith.constant 0 : i32
    %c0_i32_0 = arith.constant 0 : i32
    %c0_i32_1 = arith.constant 0 : i32
    return %c0_i32, %c0_i32_0 : i32, i32
  }
  func.func @transform_5(%arg0: i32) -> (i32, i32) {
    %c0_i32 = arith.constant 0 : i32
    %c0_i32_0 = arith.constant 0 : i32
    %c0_i32_1 = arith.constant 0 : i32
    return %c0_i32, %c0_i32_0 : i32, i32
  }
  func.func @transform_6(%arg0: i32) -> (i32, i32) {
    %c0_i32 = arith.constant 0 : i32
    %c0_i32_0 = arith.constant 0 : i32
    return %arg0, %c0_i32 : i32, i32
  }
}

</mosaic_0001>

<llo_original>
// kernel: bert_encoder_forward.14
$region0: #{bert_encoder_forward.14}
  #allocation0 [shape = 'u32[]', space=smem, size = 0x4, offset = 0x4, fixed_abs, tag = 'smem constant byte address 0x4 - core index']
  #allocation1 [shape = 'u32[144,128]{1,0:T(1,128)}', space=vmem, size = 0x12000, scoped, tag = 'internal scratch']
  %s0 = inlined_call_operand.vmem [shape: bf16[16,32], index: 0, kind: input, shape index: {}]
  %s1 = inlined_call_operand.vmem [shape: bf16[32,32], index: 1, kind: input, shape index: {}]
  %s2 = inlined_call_operand.vmem [shape: f32[1,32], index: 2, kind: input, shape index: {}]
  %s3 = inlined_call_operand.vmem [shape: bf16[16,32], index: 3, kind: input, shape index: {}]
  %s4 = inlined_call_operand.vmem [shape: f32[1,32], index: 4, kind: input, shape index: {}]
  %s5 = inlined_call_operand.vmem [shape: f32[1,32], index: 5, kind: input, shape index: {}]
  %s6 = inlined_call_operand.vmem [shape: bf16[16,32], index: 6, kind: output, shape index: {}]
  %s7 = sld [smem:[#allocation0]]
  $region34: #{bert_encoder_forward.14} parent=0
    _
  %s9 = ssub.s32 1, %s7
  %s10 = scalar_select 0, %s9, %s7
  // Predicated region
  $region2: #{bert_encoder_forward.14} parent=0 // pred_check
    _
  $region3: #{bert_encoder_forward.14} parent=0 // pred_check_branch
    %12 = sbr.rel (0) target = $region5
  $region4: #{bert_encoder_forward.14} parent=0 // pred_region
    _
  $region5: #{bert_encoder_forward.14} parent=0 // pred_fallthru
    _
  // Predicated region
  $region6: #{bert_encoder_forward.14} parent=0 // pred_check
    _
  $region7: #{bert_encoder_forward.14} parent=0 // pred_check_branch
    %14 = sbr.rel (0) target = $region9
  $region8: #{bert_encoder_forward.14} parent=0 // pred_region
    _
  $region9: #{bert_encoder_forward.14} parent=0 // pred_fallthru
    _
  // Predicated region
  $region10: #{bert_encoder_forward.14} parent=0 // pred_check
    _
  $region11: #{bert_encoder_forward.14} parent=0 // pred_check_branch
    %16 = sbr.rel (0) target = $region13
  $region12: #{bert_encoder_forward.14} parent=0 // pred_region
    _
  $region13: #{bert_encoder_forward.14} parent=0 // pred_fallthru
    _
  // Predicated region
  $region14: #{bert_encoder_forward.14} parent=0 // pred_check
    _
  $region15: #{bert_encoder_forward.14} parent=0 // pred_check_branch
    %18 = sbr.rel (0) target = $region17
  $region16: #{bert_encoder_forward.14} parent=0 // pred_region
    _
  $region17: #{bert_encoder_forward.14} parent=0 // pred_fallthru
    _
  // Predicated region
  $region18: #{bert_encoder_forward.14} parent=0 // pred_check
    _
  $region19: #{bert_encoder_forward.14} parent=0 // pred_check_branch
    %20 = sbr.rel (0) target = $region21
  $region20: #{bert_encoder_forward.14} parent=0 // pred_region
    _
  $region21: #{bert_encoder_forward.14} parent=0 // pred_fallthru
    _
  // Predicated region
  $region22: #{bert_encoder_forward.14} parent=0 // pred_check
    _
  $region23: #{bert_encoder_forward.14} parent=0 // pred_check_branch
    %22 = sbr.rel (0) target = $region25
  $region24: #{bert_encoder_forward.14} parent=0 // pred_region
    _
  $region25: #{bert_encoder_forward.14} parent=0 // pred_fallthru
    _
  %v24 = vld [vmem:[%s0] sm:$0xf]
  %v25 = vld [vmem:[%s0 + $0x4] sm:$0xf]
  %v26 = vld [vmem:[%s1] sm:$0xf]
  %v27 = vld [vmem:[%s1 + $0x4] sm:$0xf]
  %v28 = vld [vmem:[%s1 + $0x8] sm:$0xf]
  %v29 = vld [vmem:[%s1 + $0xc] sm:$0xf]
  %v30 = vld [vmem:[%s2] sm:$0x1]
  %v32 = vlaneseq
  %v33 = vshrl.u32 %v32, 7
  %v34 = vsub.s32 0, %v33
  %v35 = vrot.slane %v30, %v34
  %v39 = vunpack.c.l.b16 %v24
  %v40 = vunpack.c.l.b16 %v25
  %v41 = vpack.c.b16 %v40, %v39
  %v46 = vunpack.c.l.b16 %v26
  %v47 = vunpack.c.l.b16 %v27
  %v48 = vunpack.c.l.b16 %v28
  %v49 = vunpack.c.l.b16 %v29
  %v50 = vpack.c.b16 %v47, %v46
  %v51 = vpack.c.b16 %v49, %v48
  %vm54 = vcmask 261120
  %v56 = vsel %vm54, %v41, 0
  %58 = vmatprep.subr.bf16.mxu0 0
  %59 = vmatpush1.bf16.msra.mxu0 %v50
  %60 = vmatprep.subr.bf16.mxu0 0
  %61 = vmatpush1.bf16.msra.mxu0 %v51
  %62 = vmatprep.subr.bf16.mxu0 0
  %63 = vmatpush1.bf16.msra.mxu0 0
  %64 = vmatprep.subr.bf16.mxu0 0
  %65 = vmatpush1.bf16.msra.mxu0 0
  %66 = vmatprep.subr.bf16.mxu0 0
  %67 = vmatpush1.bf16.msra.mxu0 0
  %68 = vmatprep.subr.bf16.mxu0 0
  %69 = vmatpush1.bf16.msra.mxu0 0
  %70 = vmatprep.subr.bf16.mxu0 0
  %71 = vmatpush1.bf16.msra.mxu0 0
  %72 = vmatprep.subr.bf16.mxu0 0
  %73 = vmatpush1.bf16.msra.mxu0 0
  %74 = vmatprep.subr.bf16.mxu0 0
  %75 = vmatpush1.bf16.msra.mxu0 0
  %76 = vmatprep.subr.bf16.mxu0 0
  %77 = vmatpush1.bf16.msra.mxu0 0
  %78 = vmatprep.subr.bf16.mxu0 0
  %79 = vmatpush1.bf16.msra.mxu0 0
  %80 = vmatprep.subr.bf16.mxu0 0
  %81 = vmatpush1.bf16.msra.mxu0 0
  %82 = vmatprep.subr.bf16.mxu0 0
  %83 = vmatpush1.bf16.msra.mxu0 0
  %84 = vmatprep.subr.bf16.mxu0 0
  %85 = vmatpush1.bf16.msra.mxu0 0
  %86 = vmatprep.subr.bf16.mxu0 0
  %87 = vmatpush1.bf16.msra.mxu0 0
  %88 = vmatprep.subr.bf16.mxu0 0
  %89 = vmatpush1.bf16.msra.mxu0 0
  %90 = vmatprep.mubr.bf16.mxu0 0
  %91 = vmatmul.mubr.bf16.gmra.mrb[0].mxu0 %v56
  %v92 = vpop.f32.mrb[0].mxu0
  %v93 = vadd.f32 %v35, %v92
  %v94 = vpop.f32.mrb[0].mxu0
  %v95 = vpop.f32.mrb[0].mxu0
  %v96 = vadd.f32 %v35, %v95
  %v97 = vpop.f32.mrb[0].mxu0
  %98 = vdwg.mxu0
  %v99 = vld [vmem:[%s3] sm:$0xf]
  %v100 = vld [vmem:[%s3 + $0x4] sm:$0xf]
  %v101 = vunpack.c.l.bf16 %v99
  %v102 = vunpack.c.l.bf16 %v100
  %v103 = vadd.f32 %v93, %v101
  %v104 = vadd.f32 %v96, %v102
  %v105 = vsel %vm54, %v103, 0.0
  %106 = vadd.xlane.f32.xlu0 %v105
  %v107 = vpop.xlane.xlu0 %106
  %v108 = vsel %vm54, %v104, 0.0
  %109 = vadd.xlane.f32.xlu0 %v108
  %v110 = vpop.xlane.xlu0 %109
  %v111 = vrcp.pop 32.0
  %v112 = vmul.f32 %v107, %v111
  %v113 = vmul.f32 %v110, %v111
  %v114 = vsub.f32 %v103, %v112
  %v115 = vsub.f32 %v104, %v113
  %v116 = vmul.f32 %v114, %v114
  %v117 = vmul.f32 %v115, %v115
  %v118 = vsel %vm54, %v116, 0.0
  %119 = vadd.xlane.f32.xlu0 %v118
  %v120 = vpop.xlane.xlu0 %119
  %v121 = vsel %vm54, %v117, 0.0
  %122 = vadd.xlane.f32.xlu0 %v121
  %v123 = vpop.xlane.xlu0 %122
  %v124 = vmul.f32 %v120, %v111
  %v125 = vmul.f32 %v123, %v111
  %v126 = vadd.f32 %v124, 1e-12
  %v127 = vadd.f32 %v125, 1e-12
  %v128 = vrsqrt.pop %v126
  %v129 = vrsqrt.pop %v127
  %v130 = vmul.f32 %v114, %v128
  %v131 = vmul.f32 %v115, %v129
  %v132 = vld [vmem:[%s4] sm:$0x1]
  %v134 = vlaneseq
  %v135 = vshrl.u32 %v134, 7
  %v136 = vsub.s32 0, %v135
  %v137 = vrot.slane %v132, %v136
  %v139 = vmul.f32 %v130, %v137
  %v140 = vmul.f32 %v131, %v137
  %v141 = vld [vmem:[%s5] sm:$0x1]
  %v143 = vlaneseq
  %v144 = vshrl.u32 %v143, 7
  %v145 = vsub.s32 0, %v144
  %v146 = vrot.slane %v141, %v145
  %v148 = vadd.f32 %v139, %v146
  %v149 = vadd.f32 %v140, %v146
  %v150 = vpack.c.bf16 %v149, %v148
  %v152 = vunpack.c.l.b16 %v150
  %v153 = vunpack.c.h.b16 %v150
  %v154 = vpack.c.b16 %v152, %v152
  %v155 = vpack.c.b16 %v153, %v153
  %vm158 = vcmask 257024
  %159 = vst.msk [vmem:[%s6] sm:$0xf] %vm158, %v154
  %160 = vst.msk [vmem:[%s6 + $0x4] sm:$0xf] %vm158, %v155
  // Predicated region
  $region26: #{bert_encoder_forward.14} parent=0 // pred_check
    _
  $region27: #{bert_encoder_forward.14} parent=0 // pred_check_branch
    %162 = sbr.rel (0) target = $region29
  $region28: #{bert_encoder_forward.14} parent=0 // pred_region
    _
  $region29: #{bert_encoder_forward.14} parent=0 // pred_fallthru
    _
  // Predicated region
  $region30: #{bert_encoder_forward.14} parent=0 // pred_check
    _
  $region31: #{bert_encoder_forward.14} parent=0 // pred_check_branch
    %164 = sbr.rel (0) target = $region33
  $region32: #{bert_encoder_forward.14} parent=0 // pred_region
    _
  $region33: #{bert_encoder_forward.14} parent=0 // pred_fallthru
    _

// kernel: bert_encoder_forward.11
$region0: #{bert_encoder_forward.11}
  #allocation0 [shape = 'u32[]', space=smem, size = 0x4, offset = 0x4, fixed_abs, tag = 'smem constant byte address 0x4 - core index']
  #allocation1 [shape = 'u32[144,128]{1,0:T(1,128)}', space=vmem, size = 0x12000, scoped, tag = 'internal scratch']
  %s0 = inlined_call_operand.vmem [shape: f32[2,8,32], index: 0, kind: input, shape index: {}]
  %s1 = inlined_call_operand.vmem [shape: f32[2,8,32], index: 1, kind: input, shape index: {}]
  %s2 = inlined_call_operand.vmem [shape: f32[8,32], index: 2, kind: input, shape index: {}]
  %s3 = inlined_call_operand.vmem [shape: f32[1,32], index: 3, kind: input, shape index: {}]
  %s4 = inlined_call_operand.vmem [shape: f32[1,32], index: 4, kind: input, shape index: {}]
  %s5 = inlined_call_operand.vmem [shape: bf16[2,8,32], index: 5, kind: output, shape index: {}]
  %s6 = sld [smem:[#allocation0]]
  $region53: #{bert_encoder_forward.11} parent=0
    _
  %s8 = ssub.s32 1, %s6
  %s9 = scalar_select 0, %s8, %s6
  loop: start=0, step=1, limit=4
  $region2: #{bert_encoder_forward.11} parent=0 // loop_pre_header
    _
  $region3: #{bert_encoder_forward.11} parent=0 // loop_header
    %s11 = sphi 0, %s15
    %p12 = scmp.ge.s32.totalorder %s11, 4
    %s18 = sphi 0, %s30
    %s19 = sphi 0, %s26
    %s20 = sphi 0, %s18
    %s21 = sphi 0, %s19
    %s22 = sphi 0, %s20
    %s23 = sphi 0, %s21
    %s35 = sphi 0, %s37
    %s38 = sphi 0, %s35
    %s39 = sphi 0, %s38
    %s55 = sphi 0, %s39
    %s63 = sphi 0, %s65
    %s66 = sphi 0, %s63
    %s67 = sphi 0, %s66
    %s83 = sphi 0, %s67
    %s89 = sphi 0, %s91
    %s92 = sphi 0, %s89
    %s93 = sphi 0, %s92
    %s109 = sphi 0, %s93
    %s113 = sphi 0, %s113
    %s115 = sphi 0, %s113
    %s116 = sphi 0, %s115
    %s130 = sphi 0, %s116
    %s134 = sphi 0, %s134
    %s136 = sphi 0, %s134
    %s137 = sphi 0, %s136
    %s151 = sphi 0, %s137
    %s159 = sphi 0, %s161
    %s162 = sphi 0, %s159
    %s163 = sphi 0, %s162
    %s179 = sphi 0, %s163
  $region4: #{bert_encoder_forward.11} parent=0 // loop_header_branch
    %14 = sbr.rel (%p12) target = $region8
  $region5: #{bert_encoder_forward.11} parent=0 // loop_body
    %s16 = ssub.s32 %s11, 1
    %s17 = ssub.s32 %s11, 2
    %s24 = sadd.s32 1, %s19
    %p25 = scmp.ge.s32.totalorder %s24, 1
    %s26 = scalar_select %p25, 0, %s24
    %s27 = sadd.s32 1, %s18
    %s28 = scalar_select %p25, %s27, %s18
    %p29 = scmp.ge.s32.totalorder %s28, 2
    %s30 = scalar_select %p29, 0, %s28
    %s31 = ssub.s32 %s18, %s30
    %s32 = ssub.s32 %s19, %s26
    %s33 = sor.u32 %s31, %s32
    %p34 = scmp.eq.s32.totalorder %s33, 0
    %s36 = sadd.s32 %s35, 1
    %s37 = scalar_select %p34, %s35, %s36
    %p40 = pneg %p34
    %p41 = scmp.eq.s32.totalorder %s11, 1
    %p42 = por %p40, %p41
    %p43 = scmp.ne.s32.totalorder %s35, %s38
    %p44 = scmp.eq.s32.totalorder %s11, 0
    %p45 = por %p43, %p44
    %p46 = scmp.ne.s32.totalorder %s35, %s38
    %p47 = scmp.eq.s32.totalorder %s16, 1
    %p48 = por %p46, %p47
    %p49 = scmp.ne.s32.totalorder %s38, %s39
    %p50 = scmp.eq.s32.totalorder %s16, 0
    %p51 = por %p49, %p50
    %p52 = scmp.ne.s32.totalorder %s38, %s39
    %p53 = scmp.eq.s32.totalorder %s17, 1
    %p54 = por %p52, %p53
    %p56 = scmp.ne.s32.totalorder %s39, %s55
    %p57 = scmp.eq.s32.totalorder %s17, 0
    %p58 = por %p56, %p57
    %s59 = ssub.s32 %s18, %s30
    %s60 = ssub.s32 %s19, %s26
    %s61 = sor.u32 %s59, %s60
    %p62 = scmp.eq.s32.totalorder %s61, 0
    %s64 = sadd.s32 %s63, 1
    %s65 = scalar_select %p62, %s63, %s64
    %p68 = pneg %p62
    %p69 = scmp.eq.s32.totalorder %s11, 1
    %p70 = por %p68, %p69
    %p71 = scmp.ne.s32.totalorder %s63, %s66
    %p72 = scmp.eq.s32.totalorder %s11, 0
    %p73 = por %p71, %p72
    %p74 = scmp.ne.s32.totalorder %s63, %s66
    %p75 = scmp.eq.s32.totalorder %s16, 1
    %p76 = por %p74, %p75
    %p77 = scmp.ne.s32.totalorder %s66, %s67
    %p78 = scmp.eq.s32.totalorder %s16, 0
    %p79 = por %p77, %p78
    %p80 = scmp.ne.s32.totalorder %s66, %s67
    %p81 = scmp.eq.s32.totalorder %s17, 1
    %p82 = por %p80, %p81
    %p84 = scmp.ne.s32.totalorder %s67, %s83
    %p85 = scmp.eq.s32.totalorder %s17, 0
    %p86 = por %p84, %p85
    %s87 = ssub.s32 %s19, %s26
    %p88 = scmp.eq.s32.totalorder %s87, 0
    %s90 = sadd.s32 %s89, 1
    %s91 = scalar_select %p88, %s89, %s90
    %p94 = pneg %p88
    %p95 = scmp.eq.s32.totalorder %s11, 1
    %p96 = por %p94, %p95
    %p97 = scmp.ne.s32.totalorder %s89, %s92
    %p98 = scmp.eq.s32.totalorder %s11, 0
    %p99 = por %p97, %p98
    %p100 = scmp.ne.s32.totalorder %s89, %s92
    %p101 = scmp.eq.s32.totalorder %s16, 1
    %p102 = por %p100, %p101
    %p103 = scmp.ne.s32.totalorder %s92, %s93
    %p104 = scmp.eq.s32.totalorder %s16, 0
    %p105 = por %p103, %p104
    %p106 = scmp.ne.s32.totalorder %s92, %s93
    %p107 = scmp.eq.s32.totalorder %s17, 1
    %p108 = por %p106, %p107
    %p110 = scmp.ne.s32.totalorder %s93, %s109
    %p111 = scmp.eq.s32.totalorder %s17, 0
    %p112 = por %p110, %p111
    %s114 = sadd.s32 %s113, 1
    %p117 = scmp.eq.s32.totalorder %s11, 1
    %p118 = scmp.ne.s32.totalorder %s113, %s115
    %p119 = scmp.eq.s32.totalorder %s11, 0
    %p120 = por %p118, %p119
    %p121 = scmp.ne.s32.totalorder %s113, %s115
    %p122 = scmp.eq.s32.totalorder %s16, 1
    %p123 = por %p121, %p122
    %p124 = scmp.ne.s32.totalorder %s115, %s116
    %p125 = scmp.eq.s32.totalorder %s16, 0
    %p126 = por %p124, %p125
    %p127 = scmp.ne.s32.totalorder %s115, %s116
    %p128 = scmp.eq.s32.totalorder %s17, 1
    %p129 = por %p127, %p128
    %p131 = scmp.ne.s32.totalorder %s116, %s130
    %p132 = scmp.eq.s32.totalorder %s17, 0
    %p133 = por %p131, %p132
    %s135 = sadd.s32 %s134, 1
    %p138 = scmp.eq.s32.totalorder %s11, 1
    %p139 = scmp.ne.s32.totalorder %s134, %s136
    %p140 = scmp.eq.s32.totalorder %s11, 0
    %p141 = por %p139, %p140
    %p142 = scmp.ne.s32.totalorder %s134, %s136
    %p143 = scmp.eq.s32.totalorder %s16, 1
    %p144 = por %p142, %p143
    %p145 = scmp.ne.s32.totalorder %s136, %s137
    %p146 = scmp.eq.s32.totalorder %s16, 0
    %p147 = por %p145, %p146
    %p148 = scmp.ne.s32.totalorder %s136, %s137
    %p149 = scmp.eq.s32.totalorder %s17, 1
    %p150 = por %p148, %p149
    %p152 = scmp.ne.s32.totalorder %s137, %s151
    %p153 = scmp.eq.s32.totalorder %s17, 0
    %p154 = por %p152, %p153
    %s155 = ssub.s32 %s18, %s30
    %s156 = ssub.s32 %s19, %s26
    %s157 = sor.u32 %s155, %s156
    %p158 = scmp.eq.s32.totalorder %s157, 0
    %s160 = sadd.s32 %s159, 1
    %s161 = scalar_select %p158, %s159, %s160
    %p164 = pneg %p158
    %p165 = scmp.eq.s32.totalorder %s11, 1
    %p166 = por %p164, %p165
    %p167 = scmp.ne.s32.totalorder %s159, %s162
    %p168 = scmp.eq.s32.totalorder %s11, 0
    %p169 = por %p167, %p168
    %p170 = scmp.ne.s32.totalorder %s159, %s162
    %p171 = scmp.eq.s32.totalorder %s16, 1
    %p172 = por %p170, %p171
    %p173 = scmp.ne.s32.totalorder %s162, %s163
    %p174 = scmp.eq.s32.totalorder %s16, 0
    %p175 = por %p173, %p174
    %p176 = scmp.ne.s32.totalorder %s162, %s163
    %p177 = scmp.eq.s32.totalorder %s17, 1
    %p178 = por %p176, %p177
    %p180 = scmp.ne.s32.totalorder %s163, %s179
    %p181 = scmp.eq.s32.totalorder %s17, 0
    %p182 = por %p180, %p181
    %p183 = scmp.le.s32.totalorder 1, %s11
    %p184 = scmp.lt.s32.totalorder %s11, 3
    %p185 = pnand %p183, %p184
    %p186 = pneg %p185
    // Predicated region
    $region9: #{bert_encoder_forward.11} parent=5 // pred_check
      _
    $region10: #{bert_encoder_forward.11} parent=5 // pred_check_branch
      %188 = sbr.rel (%p185) target = $region12
    $region11: #{bert_encoder_forward.11} parent=5 // pred_region
      %s189 = ssub.s32 %s11, 1
      // Predicated region
      $region13: #{bert_encoder_forward.11} parent=11 // pred_check
        %p190 = pneg %p105
      $region14: #{bert_encoder_forward.11} parent=11 // pred_check_branch
        %192 = sbr.rel (%p190) target = $region16
      $region15: #{bert_encoder_forward.11} parent=11 // pred_region
        %p193 = scmp.lt.s32.totalorder %s21, 0
        %s194 = scalar_select %p193, %s21, 0
        %s195 = smul.addr %s194, 8
        %s196 = scalar_lea.vmem %s2, %s195
      $region16: #{bert_encoder_forward.11} parent=11 // pred_fallthru
        _
      // Predicated region
      $region17: #{bert_encoder_forward.11} parent=11 // pred_check
        %p197 = pneg %p126
      $region18: #{bert_encoder_forward.11} parent=11 // pred_check_branch
        %199 = sbr.rel (%p197) target = $region20
      $region19: #{bert_encoder_forward.11} parent=11 // pred_region
        _
      $region20: #{bert_encoder_forward.11} parent=11 // pred_fallthru
        _
      // Predicated region
      $region21: #{bert_encoder_forward.11} parent=11 // pred_check
        %p200 = pneg %p147
      $region22: #{bert_encoder_forward.11} parent=11 // pred_check_branch
        %202 = sbr.rel (%p200) target = $region24
      $region23: #{bert_encoder_forward.11} parent=11 // pred_region
        _
      $region24: #{bert_encoder_forward.11} parent=11 // pred_fallthru
        _
    $region12: #{bert_encoder_forward.11} parent=5 // pred_fallthru
      _
    %p203 = scmp.lt.s32.totalorder %s11, 2
    // Predicated region
    $region25: #{bert_encoder_forward.11} parent=5 // pred_check
      %p204 = pneg %p203
    $region26: #{bert_encoder_forward.11} parent=5 // pred_check_branch
      %206 = sbr.rel (%p204) target = $region28
    $region27: #{bert_encoder_forward.11} parent=5 // pred_region
      // Predicated region
      $region29: #{bert_encoder_forward.11} parent=27 // pred_check
        %p207 = pneg %p45
      $region30: #{bert_encoder_forward.11} parent=27 // pred_check_branch
        %209 = sbr.rel (%p207) target = $region32
      $region31: #{bert_encoder_forward.11} parent=27 // pred_region
        %p210 = scmp.lt.s32.totalorder %s18, 1
        %s211 = scalar_select %p210, %s18, 1
        %p212 = scmp.lt.s32.totalorder %s19, 0
        %s213 = scalar_select %p212, %s19, 0
        %s214 = sadd.s32 %s213, %s211
        %s215 = smul.addr %s214, 8
        %s216 = scalar_lea.vmem %s0, %s215
      $region32: #{bert_encoder_forward.11} parent=27 // pred_fallthru
        _
      // Predicated region
      $region33: #{bert_encoder_forward.11} parent=27 // pred_check
        %p217 = pneg %p73
      $region34: #{bert_encoder_forward.11} parent=27 // pred_check_branch
        %219 = sbr.rel (%p217) target = $region36
      $region35: #{bert_encoder_forward.11} parent=27 // pred_region
        %p220 = scmp.lt.s32.totalorder %s18, 1
        %s221 = scalar_select %p220, %s18, 1
        %p222 = scmp.lt.s32.totalorder %s19, 0
        %s223 = scalar_select %p222, %s19, 0
        %s224 = sadd.s32 %s223, %s221
        %s225 = smul.addr %s224, 8
        %s226 = scalar_lea.vmem %s1, %s225
      $region36: #{bert_encoder_forward.11} parent=27 // pred_fallthru
        _
    $region28: #{bert_encoder_forward.11} parent=5 // pred_fallthru
      _
    %p227 = scmp.le.s32.totalorder 1, %s11
    %p228 = scmp.lt.s32.totalorder %s11, 3
    %p229 = pnand %p227, %p228
    %p230 = pneg %p229
    // Predicated region
    $region37: #{bert_encoder_forward.11} parent=5 // pred_check
      _
    $region38: #{bert_encoder_forward.11} parent=5 // pred_check_branch
      %232 = sbr.rel (%p229) target = $region40
    $region39: #{bert_encoder_forward.11} parent=5 // pred_region
      %s233 = ssub.s32 %s11, 1
      %p234 = scmp.lt.s32.totalorder %s20, 1
      %s235 = scalar_select %p234, %s20, 1
      %p236 = scmp.lt.s32.totalorder %s21, 0
      %s237 = scalar_select %p236, %s21, 0
      %s238 = sadd.s32 %s237, %s235
      %s239 = smul.addr %s238, 8
      %s240 = scalar_lea.vmem %s0, %s239
      %p241 = pneg %p51
      %p242 = pneg %p48
      %p243 = scmp.lt.s32.totalorder %s20, 1
      %s244 = scalar_select %p243, %s20, 1
      %p245 = scmp.lt.s32.totalorder %s21, 0
      %s246 = scalar_select %p245, %s21, 0
      %s247 = sadd.s32 %s246, %s244
      %s248 = smul.addr %s247, 8
      %s249 = scalar_lea.vmem %s1, %s248
      %p250 = pneg %p79
      %p251 = pneg %p76
      %p252 = scmp.lt.s32.totalorder %s21, 0
      %s253 = scalar_select %p252, %s21, 0
      %s254 = smul.addr %s253, 8
      %s255 = scalar_lea.vmem %s2, %s254
      %p256 = pneg %p105
      %p257 = pneg %p102
      %p258 = pneg %p126
      %p259 = pneg %p123
      %p260 = pneg %p147
      %p261 = pneg %p144
      %p262 = pneg %p175
      %p263 = pneg %p172
      %p264 = scmp.lt.s32.totalorder %s20, 1
      %s265 = scalar_select %p264, %s20, 1
      %p266 = scmp.lt.s32.totalorder %s21, 0
      %s267 = scalar_select %p266, %s21, 0
      %s268 = sadd.s32 %s267, %s265
      %s269 = smul.addr %s268, 4
      %s270 = scalar_lea.vmem %s5, %s269
      %p271 = scmp.lt.s32.totalorder %s20, 1
      %s272 = scalar_select %p271, %s20, 1
      %p273 = scmp.lt.s32.totalorder %s21, 0
      %s274 = scalar_select %p273, %s21, 0
      %s275 = sadd.s32 %s274, %s272
      %s276 = smul.addr %s275, 8
      %s277 = scalar_lea.vmem %s0, %s276
      %p278 = scmp.lt.s32.totalorder %s20, 1
      %s279 = scalar_select %p278, %s20, 1
      %p280 = scmp.lt.s32.totalorder %s21, 0
      %s281 = scalar_select %p280, %s21, 0
      %s282 = sadd.s32 %s281, %s279
      %s283 = smul.addr %s282, 8
      %s284 = scalar_lea.vmem %s1, %s283
      %p285 = scmp.lt.s32.totalorder %s21, 0
      %s286 = scalar_select %p285, %s21, 0
      %s287 = smul.addr %s286, 8
      %s288 = scalar_lea.vmem %s2, %s287
      %p289 = scmp.lt.s32.totalorder %s20, 1
      %s290 = scalar_select %p289, %s20, 1
      %p291 = scmp.lt.s32.totalorder %s21, 0
      %s292 = scalar_select %p291, %s21, 0
      %s293 = sadd.s32 %s292, %s290
      %s294 = smul.addr %s293, 4
      %s295 = scalar_lea.vmem %s5, %s294
      %v296 = vld [vmem:[%s277] sm:$0xff]
      %v297 = vld [vmem:[%s284] sm:$0xff]
      %v298 = vadd.f32 %v296, %v297
      %v299 = vld [vmem:[%s288] sm:$0xff]
      %v300 = vadd.f32 %v298, %v299
      %vm301 = vcmask 261120
      %v302 = vsel %vm301, %v300, 0.0
      %303 = vadd.xlane.f32.xlu0 %v302
      %v304 = vpop.xlane.xlu0 %303
      %v305 = vrcp.pop 32.0
      %v306 = vmul.f32 %v304, %v305
      %v307 = vsub.f32 %v300, %v306
      %v308 = vmul.f32 %v307, %v307
      %v309 = vsel %vm301, %v308, 0.0
      %310 = vadd.xlane.f32.xlu0 %v309
      %v311 = vpop.xlane.xlu0 %310
      %v312 = vmul.f32 %v311, %v305
      %v313 = vadd.f32 %v312, 1e-12
      %v314 = vrsqrt.pop %v313
      %v315 = vmul.f32 %v307, %v314
      %v316 = vld [vmem:[%s3] sm:$0x1]
      %v318 = vlaneseq
      %v319 = vshrl.u32 %v318, 7
      %v320 = vsub.s32 0, %v319
      %v321 = vrot.slane %v316, %v320
      %v323 = vmul.f32 %v315, %v321
      %v324 = vld [vmem:[%s4] sm:$0x1]
      %v326 = vlaneseq
      %v327 = vshrl.u32 %v326, 7
      %v328 = vsub.s32 0, %v327
      %v329 = vrot.slane %v324, %v328
      %v331 = vadd.f32 %v323, %v329
      %v332 = vpack.c.bf16 %v331, %v331
      %vm333 = vcmask 257024
      %334 = vst.msk [vmem:[%s295] sm:$0xf] %vm333, %v332
      %p335 = scmp.lt.s32.totalorder %s20, 1
      %s336 = scalar_select %p335, %s20, 1
      %p337 = scmp.lt.s32.totalorder %s21, 0
      %s338 = scalar_select %p337, %s21, 0
      %s339 = sadd.s32 %s338, %s336
      %s340 = smul.addr %s339, 4
      %s341 = scalar_lea.vmem %s5, %s340
      // Predicated region
      $region41: #{bert_encoder_forward.11} parent=39 // pred_check
        %p342 = pneg %p172
      $region42: #{bert_encoder_forward.11} parent=39 // pred_check_branch
        %344 = sbr.rel (%p342) target = $region44
      $region43: #{bert_encoder_forward.11} parent=39 // pred_region
        _
      $region44: #{bert_encoder_forward.11} parent=39 // pred_fallthru
        _
    $region40: #{bert_encoder_forward.11} parent=5 // pred_fallthru
      _
    %p345 = scmp.le.s32.totalorder 2, %s11
    // Predicated region
    $region45: #{bert_encoder_forward.11} parent=5 // pred_check
      %p346 = pneg %p345
    $region46: #{bert_encoder_forward.11} parent=5 // pred_check_branch
      %348 = sbr.rel (%p346) target = $region48
    $region47: #{bert_encoder_forward.11} parent=5 // pred_region
      %s349 = ssub.s32 %s11, 2
      // Predicated region
      $region49: #{bert_encoder_forward.11} parent=47 // pred_check
        %p350 = pneg %p178
      $region50: #{bert_encoder_forward.11} parent=47 // pred_check_branch
        %352 = sbr.rel (%p350) target = $region52
      $region51: #{bert_encoder_forward.11} parent=47 // pred_region
        %p353 = scmp.lt.s32.totalorder %s22, 1
        %s354 = scalar_select %p353, %s22, 1
        %p355 = scmp.lt.s32.totalorder %s23, 0
        %s356 = scalar_select %p355, %s23, 0
        %s357 = sadd.s32 %s356, %s354
        %s358 = smul.addr %s357, 4
        %s359 = scalar_lea.vmem %s5, %s358
      $region52: #{bert_encoder_forward.11} parent=47 // pred_fallthru
        _
    $region48: #{bert_encoder_forward.11} parent=5 // pred_fallthru
      _
  $region6: #{bert_encoder_forward.11} parent=0 // loop_footer
    %s15 = sadd.s32 1, %s11
  $region7: #{bert_encoder_forward.11} parent=0 // loop_footer_branch
    %10 = sbr.rel target = $region3
  $region8: #{bert_encoder_forward.11} parent=0 // loop_exit
    _

// kernel: bert_encoder_forward.12
$region0: #{bert_encoder_forward.12}
  #allocation0 [shape = 'u32[]', space=smem, size = 0x4, offset = 0x4, fixed_abs, tag = 'smem constant byte address 0x4 - core index']
  #allocation1 [shape = 'u32[144,128]{1,0:T(1,128)}', space=vmem, size = 0x12000, scoped, tag = 'internal scratch']
  %s0 = inlined_call_operand.vmem [shape: bf16[16,32], index: 0, kind: input, shape index: {}]
  %s1 = inlined_call_operand.vmem [shape: bf16[32,96], index: 1, kind: input, shape index: {}]
  %s2 = inlined_call_operand.vmem [shape: f32[1,96], index: 2, kind: input, shape index: {}]
  %s3 = inlined_call_operand.vmem [shape: bf16[16,96], index: 3, kind: output, shape index: {}]
  %s4 = sld [smem:[#allocation0]]
  $region22: #{bert_encoder_forward.12} parent=0
    _
  %s6 = ssub.s32 1, %s4
  %s7 = scalar_select 0, %s6, %s4
  // Predicated region
  $region2: #{bert_encoder_forward.12} parent=0 // pred_check
    _
  $region3: #{bert_encoder_forward.12} parent=0 // pred_check_branch
    %9 = sbr.rel (0) target = $region5
  $region4: #{bert_encoder_forward.12} parent=0 // pred_region
    _
  $region5: #{bert_encoder_forward.12} parent=0 // pred_fallthru
    _
  // Predicated region
  $region6: #{bert_encoder_forward.12} parent=0 // pred_check
    _
  $region7: #{bert_encoder_forward.12} parent=0 // pred_check_branch
    %11 = sbr.rel (0) target = $region9
  $region8: #{bert_encoder_forward.12} parent=0 // pred_region
    _
  $region9: #{bert_encoder_forward.12} parent=0 // pred_fallthru
    _
  // Predicated region
  $region10: #{bert_encoder_forward.12} parent=0 // pred_check
    _
  $region11: #{bert_encoder_forward.12} parent=0 // pred_check_branch
    %13 = sbr.rel (0) target = $region13
  $region12: #{bert_encoder_forward.12} parent=0 // pred_region
    _
  $region13: #{bert_encoder_forward.12} parent=0 // pred_fallthru
    _
  %v15 = vld [vmem:[%s0] sm:$0xf]
  %v16 = vld [vmem:[%s0 + $0x4] sm:$0xf]
  %v17 = vld [vmem:[%s1] sm:$0xf]
  %v18 = vld [vmem:[%s1 + $0x4] sm:$0xf]
  %v19 = vld [vmem:[%s1 + $0x8] sm:$0xf]
  %v20 = vld [vmem:[%s1 + $0xc] sm:$0xf]
  %v21 = vld [vmem:[%s2] sm:$0x1]
  %v23 = vlaneseq
  %v24 = vshrl.u32 %v23, 7
  %v25 = vsub.s32 0, %v24
  %v26 = vrot.slane %v21, %v25
  %v30 = vunpack.c.l.b16 %v15
  %v31 = vunpack.c.l.b16 %v16
  %v32 = vpack.c.b16 %v31, %v30
  %v37 = vunpack.c.l.b16 %v17
  %v38 = vunpack.c.l.b16 %v18
  %v39 = vunpack.c.l.b16 %v19
  %v40 = vunpack.c.l.b16 %v20
  %v41 = vpack.c.b16 %v38, %v37
  %v42 = vpack.c.b16 %v40, %v39
  %vm45 = vcmask 261120
  %v47 = vsel %vm45, %v32, 0
  %49 = vmatprep.subr.bf16.mxu0 0
  %50 = vmatpush1.bf16.msra.mxu0 %v41
  %51 = vmatprep.subr.bf16.mxu0 0
  %52 = vmatpush1.bf16.msra.mxu0 %v42
  %53 = vmatprep.subr.bf16.mxu0 0
  %54 = vmatpush1.bf16.msra.mxu0 0
  %55 = vmatprep.subr.bf16.mxu0 0
  %56 = vmatpush1.bf16.msra.mxu0 0
  %57 = vmatprep.subr.bf16.mxu0 0
  %58 = vmatpush1.bf16.msra.mxu0 0
  %59 = vmatprep.subr.bf16.mxu0 0
  %60 = vmatpush1.bf16.msra.mxu0 0
  %61 = vmatprep.subr.bf16.mxu0 0
  %62 = vmatpush1.bf16.msra.mxu0 0
  %63 = vmatprep.subr.bf16.mxu0 0
  %64 = vmatpush1.bf16.msra.mxu0 0
  %65 = vmatprep.subr.bf16.mxu0 0
  %66 = vmatpush1.bf16.msra.mxu0 0
  %67 = vmatprep.subr.bf16.mxu0 0
  %68 = vmatpush1.bf16.msra.mxu0 0
  %69 = vmatprep.subr.bf16.mxu0 0
  %70 = vmatpush1.bf16.msra.mxu0 0
  %71 = vmatprep.subr.bf16.mxu0 0
  %72 = vmatpush1.bf16.msra.mxu0 0
  %73 = vmatprep.subr.bf16.mxu0 0
  %74 = vmatpush1.bf16.msra.mxu0 0
  %75 = vmatprep.subr.bf16.mxu0 0
  %76 = vmatpush1.bf16.msra.mxu0 0
  %77 = vmatprep.subr.bf16.mxu0 0
  %78 = vmatpush1.bf16.msra.mxu0 0
  %79 = vmatprep.subr.bf16.mxu0 0
  %80 = vmatpush1.bf16.msra.mxu0 0
  %81 = vmatprep.mubr.bf16.mxu0 0
  %82 = vmatmul.mubr.bf16.gmra.mrb[0].mxu0 %v47
  %v83 = vpop.f32.mrb[0].mxu0
  %v84 = vadd.f32 %v26, %v83
  %v85 = vpop.f32.mrb[0].mxu0
  %v86 = vpop.f32.mrb[0].mxu0
  %v87 = vadd.f32 %v26, %v86
  %v88 = vpop.f32.mrb[0].mxu0
  %89 = vdwg.mxu0
  %v90 = vpack.c.bf16 %v87, %v84
  %v92 = vunpack.c.l.b16 %v90
  %v93 = vunpack.c.h.b16 %v90
  %v94 = vpack.c.b16 %v92, %v92
  %v95 = vpack.c.b16 %v93, %v93
  %vm98 = vcmask 781312
  %99 = vst.msk [vmem:[%s3] sm:$0xf] %vm98, %v94
  %100 = vst.msk [vmem:[%s3 + $0x4] sm:$0xf] %vm98, %v95
  // Predicated region
  $region14: #{bert_encoder_forward.12} parent=0 // pred_check
    _
  $region15: #{bert_encoder_forward.12} parent=0 // pred_check_branch
    %102 = sbr.rel (0) target = $region17
  $region16: #{bert_encoder_forward.12} parent=0 // pred_region
    _
  $region17: #{bert_encoder_forward.12} parent=0 // pred_fallthru
    _
  // Predicated region
  $region18: #{bert_encoder_forward.12} parent=0 // pred_check
    _
  $region19: #{bert_encoder_forward.12} parent=0 // pred_check_branch
    %104 = sbr.rel (0) target = $region21
  $region20: #{bert_encoder_forward.12} parent=0 // pred_region
    _
  $region21: #{bert_encoder_forward.12} parent=0 // pred_fallthru
    _

// kernel: bert_encoder_forward.13
$region0: #{bert_encoder_forward.13}
  #allocation0 [shape = 'u32[]', space=smem, size = 0x4, offset = 0x4, fixed_abs, tag = 'smem constant byte address 0x4 - core index']
  #allocation1 [shape = 'u32[144,128]{1,0:T(1,128)}', space=vmem, size = 0x12000, scoped, tag = 'internal scratch']
  %s0 = inlined_call_operand.vmem [shape: bf16[2,8,96], index: 0, kind: input, shape index: {}]
  %s1 = inlined_call_operand.vmem [shape: f32[2,1,8], index: 1, kind: input, shape index: {}]
  %s2 = inlined_call_operand.vmem [shape: bf16[2,8,32], index: 2, kind: output, shape index: {}]
  %s3 = sld [smem:[#allocation0]]
  $region41: #{bert_encoder_forward.13} parent=0
    _
  %s5 = ssub.s32 1, %s3
  %s6 = scalar_select 0, %s5, %s3
  loop: start=0, step=1, limit=4
  $region2: #{bert_encoder_forward.13} parent=0 // loop_pre_header
    _
  $region3: #{bert_encoder_forward.13} parent=0 // loop_header
    %s8 = sphi 0, %s12
    %p9 = scmp.ge.s32.totalorder %s8, 4
    %s18 = sphi 0, %s20
    %s21 = sphi 0, %s18
    %s22 = sphi 0, %s21
    %s38 = sphi 0, %s22
    %s44 = sphi 0, %s46
    %s47 = sphi 0, %s44
    %s48 = sphi 0, %s47
    %s64 = sphi 0, %s48
    %s70 = sphi 0, %s72
    %s73 = sphi 0, %s70
    %s74 = sphi 0, %s73
    %s90 = sphi 0, %s74
  $region4: #{bert_encoder_forward.13} parent=0 // loop_header_branch
    %11 = sbr.rel (%p9) target = $region8
  $region5: #{bert_encoder_forward.13} parent=0 // loop_body
    %s13 = ssub.s32 %s8, 1
    %s14 = ssub.s32 %s8, 2
    %s15 = sadd.s32 %s8, 1
    %s16 = ssub.s32 %s8, %s15
    %p17 = scmp.eq.s32.totalorder %s16, 0
    %s19 = sadd.s32 %s18, 1
    %s20 = scalar_select %p17, %s18, %s19
    %p23 = pneg %p17
    %p24 = scmp.eq.s32.totalorder %s8, 1
    %p25 = por %p23, %p24
    %p26 = scmp.ne.s32.totalorder %s18, %s21
    %p27 = scmp.eq.s32.totalorder %s8, 0
    %p28 = por %p26, %p27
    %p29 = scmp.ne.s32.totalorder %s18, %s21
    %p30 = scmp.eq.s32.totalorder %s13, 1
    %p31 = por %p29, %p30
    %p32 = scmp.ne.s32.totalorder %s21, %s22
    %p33 = scmp.eq.s32.totalorder %s13, 0
    %p34 = por %p32, %p33
    %p35 = scmp.ne.s32.totalorder %s21, %s22
    %p36 = scmp.eq.s32.totalorder %s14, 1
    %p37 = por %p35, %p36
    %p39 = scmp.ne.s32.totalorder %s22, %s38
    %p40 = scmp.eq.s32.totalorder %s14, 0
    %p41 = por %p39, %p40
    %s42 = ssub.s32 %s8, %s15
    %p43 = scmp.eq.s32.totalorder %s42, 0
    %s45 = sadd.s32 %s44, 1
    %s46 = scalar_select %p43, %s44, %s45
    %p49 = pneg %p43
    %p50 = scmp.eq.s32.totalorder %s8, 1
    %p51 = por %p49, %p50
    %p52 = scmp.ne.s32.totalorder %s44, %s47
    %p53 = scmp.eq.s32.totalorder %s8, 0
    %p54 = por %p52, %p53
    %p55 = scmp.ne.s32.totalorder %s44, %s47
    %p56 = scmp.eq.s32.totalorder %s13, 1
    %p57 = por %p55, %p56
    %p58 = scmp.ne.s32.totalorder %s47, %s48
    %p59 = scmp.eq.s32.totalorder %s13, 0
    %p60 = por %p58, %p59
    %p61 = scmp.ne.s32.totalorder %s47, %s48
    %p62 = scmp.eq.s32.totalorder %s14, 1
    %p63 = por %p61, %p62
    %p65 = scmp.ne.s32.totalorder %s48, %s64
    %p66 = scmp.eq.s32.totalorder %s14, 0
    %p67 = por %p65, %p66
    %s68 = ssub.s32 %s8, %s15
    %p69 = scmp.eq.s32.totalorder %s68, 0
    %s71 = sadd.s32 %s70, 1
    %s72 = scalar_select %p69, %s70, %s71
    %p75 = pneg %p69
    %p76 = scmp.eq.s32.totalorder %s8, 1
    %p77 = por %p75, %p76
    %p78 = scmp.ne.s32.totalorder %s70, %s73
    %p79 = scmp.eq.s32.totalorder %s8, 0
    %p80 = por %p78, %p79
    %p81 = scmp.ne.s32.totalorder %s70, %s73
    %p82 = scmp.eq.s32.totalorder %s13, 1
    %p83 = por %p81, %p82
    %p84 = scmp.ne.s32.totalorder %s73, %s74
    %p85 = scmp.eq.s32.totalorder %s13, 0
    %p86 = por %p84, %p85
    %p87 = scmp.ne.s32.totalorder %s73, %s74
    %p88 = scmp.eq.s32.totalorder %s14, 1
    %p89 = por %p87, %p88
    %p91 = scmp.ne.s32.totalorder %s74, %s90
    %p92 = scmp.eq.s32.totalorder %s14, 0
    %p93 = por %p91, %p92
    %p94 = scmp.le.s32.totalorder 1, %s8
    %p95 = scmp.lt.s32.totalorder %s8, 3
    %p96 = pnand %p94, %p95
    %p97 = pneg %p96
    // Predicated region
    $region9: #{bert_encoder_forward.13} parent=5 // pred_check
      _
    $region10: #{bert_encoder_forward.13} parent=5 // pred_check_branch
      %99 = sbr.rel (%p96) target = $region12
    $region11: #{bert_encoder_forward.13} parent=5 // pred_region
      %s100 = ssub.s32 %s8, 1
    $region12: #{bert_encoder_forward.13} parent=5 // pred_fallthru
      _
    %p101 = scmp.lt.s32.totalorder %s8, 2
    // Predicated region
    $region13: #{bert_encoder_forward.13} parent=5 // pred_check
      %p102 = pneg %p101
    $region14: #{bert_encoder_forward.13} parent=5 // pred_check_branch
      %104 = sbr.rel (%p102) target = $region16
    $region15: #{bert_encoder_forward.13} parent=5 // pred_region
      // Predicated region
      $region17: #{bert_encoder_forward.13} parent=15 // pred_check
        %p105 = pneg %p28
      $region18: #{bert_encoder_forward.13} parent=15 // pred_check_branch
        %107 = sbr.rel (%p105) target = $region20
      $region19: #{bert_encoder_forward.13} parent=15 // pred_region
        %p108 = scmp.lt.s32.totalorder %s8, 1
        %s109 = scalar_select %p108, %s8, 1
        %s110 = smul.addr %s109, 4
        %s111 = scalar_lea.vmem %s0, %s110
      $region20: #{bert_encoder_forward.13} parent=15 // pred_fallthru
        _
      // Predicated region
      $region21: #{bert_encoder_forward.13} parent=15 // pred_check
        %p112 = pneg %p54
      $region22: #{bert_encoder_forward.13} parent=15 // pred_check_branch
        %114 = sbr.rel (%p112) target = $region24
      $region23: #{bert_encoder_forward.13} parent=15 // pred_region
        %p115 = scmp.lt.s32.totalorder %s8, 1
        %s116 = scalar_select %p115, %s8, 1
        %s117 = scalar_lea.vmem %s1, %s116
      $region24: #{bert_encoder_forward.13} parent=15 // pred_fallthru
        _
    $region16: #{bert_encoder_forward.13} parent=5 // pred_fallthru
      _
    %p118 = scmp.le.s32.totalorder 1, %s8
    %p119 = scmp.lt.s32.totalorder %s8, 3
    %p120 = pnand %p118, %p119
    %p121 = pneg %p120
    // Predicated region
    $region25: #{bert_encoder_forward.13} parent=5 // pred_check
      _
    $region26: #{bert_encoder_forward.13} parent=5 // pred_check_branch
      %123 = sbr.rel (%p120) target = $region28
    $region27: #{bert_encoder_forward.13} parent=5 // pred_region
      %s124 = ssub.s32 %s8, 1
      %p125 = scmp.lt.s32.totalorder %s13, 1
      %s126 = scalar_select %p125, %s13, 1
      %s127 = smul.addr %s126, 4
      %s128 = scalar_lea.vmem %s0, %s127
      %p129 = pneg %p34
      %p130 = pneg %p31
      %p131 = scmp.lt.s32.totalorder %s13, 1
      %s132 = scalar_select %p131, %s13, 1
      %s133 = scalar_lea.vmem %s1, %s132
      %p134 = pneg %p60
      %p135 = pneg %p57
      %p136 = pneg %p86
      %p137 = pneg %p83
      %p138 = scmp.lt.s32.totalorder %s13, 1
      %s139 = scalar_select %p138, %s13, 1
      %s140 = smul.addr %s139, 4
      %s141 = scalar_lea.vmem %s2, %s140
      %p142 = scmp.lt.s32.totalorder %s13, 1
      %s143 = scalar_select %p142, %s13, 1
      %s144 = smul.addr %s143, 4
      %s145 = scalar_lea.vmem %s0, %s144
      %p146 = scmp.lt.s32.totalorder %s13, 1
      %s147 = scalar_select %p146, %s13, 1
      %s148 = scalar_lea.vmem %s1, %s147
      %p149 = scmp.lt.s32.totalorder %s13, 1
      %s150 = scalar_select %p149, %s13, 1
      %s151 = smul.addr %s150, 4
      %s152 = scalar_lea.vmem %s2, %s151
      %v155 = vld [vmem:[%s145] sm:$0xf]
      %v156 = vld [vmem:[%s148] sm:$0x1]
      %v157 = vmul.bf16 %v155, 1052065461
      %v159 = vlaneseq
      %v160 = vshrl.u32 %v159, 7
      %v161 = vsub.s32 0, %v160
      %v162 = vrot.slane %v156, %v161
      %v165 = vunpack.c.l.b16 %v155
      %v166 = vpack.c.b16 %v165, %v165
      %167 = vrot.lane.b32.xlu0 %v166, 96
      %v168 = vpop.permute.xlu0 %167
      %vm169 = vcmask 64512
      %v171 = vsel %vm169, %v157, 0
      %v174 = vsel %vm169, %v168, 0
      %176 = vmatprep.subr.bf16.mxu0 0
      %177 = vmatpush1.bf16.xpose.msra.mxu0 %v174
      %178 = vmatprep.subr.bf16.mxu0 0
      %179 = vmatpush1.bf16.xpose.msra.mxu0 0
      %180 = vmatprep.subr.bf16.mxu0 0
      %181 = vmatpush1.bf16.xpose.msra.mxu0 0
      %182 = vmatprep.subr.bf16.mxu0 0
      %183 = vmatpush1.bf16.xpose.msra.mxu0 0
      %184 = vmatprep.subr.bf16.mxu0 0
      %185 = vmatpush1.bf16.xpose.msra.mxu0 0
      %186 = vmatprep.subr.bf16.mxu0 0
      %187 = vmatpush1.bf16.xpose.msra.mxu0 0
      %188 = vmatprep.subr.bf16.mxu0 0
      %189 = vmatpush1.bf16.xpose.msra.mxu0 0
      %190 = vmatprep.subr.bf16.mxu0 0
      %191 = vmatpush1.bf16.xpose.msra.mxu0 0
      %192 = vmatprep.subr.bf16.mxu0 0
      %193 = vmatpush1.bf16.xpose.msra.mxu0 0
      %194 = vmatprep.subr.bf16.mxu0 0
      %195 = vmatpush1.bf16.xpose.msra.mxu0 0
      %196 = vmatprep.subr.bf16.mxu0 0
      %197 = vmatpush1.bf16.xpose.msra.mxu0 0
      %198 = vmatprep.subr.bf16.mxu0 0
      %199 = vmatpush1.bf16.xpose.msra.mxu0 0
      %200 = vmatprep.subr.bf16.mxu0 0
      %201 = vmatpush1.bf16.xpose.msra.mxu0 0
      %202 = vmatprep.subr.bf16.mxu0 0
      %203 = vmatpush1.bf16.xpose.msra.mxu0 0
      %204 = vmatprep.subr.bf16.mxu0 0
      %205 = vmatpush1.bf16.xpose.msra.mxu0 0
      %206 = vmatprep.subr.bf16.mxu0 0
      %207 = vmatpush1.bf16.xpose.msra.mxu0 0
      %208 = vmatprep.mubr.bf16.mxu0 0
      %209 = vmatmul.mubr.bf16.gmra.mrb[0].mxu0 %v171
      %v210 = vpop.f32.mrb[0].mxu0
      %v211 = vadd.f32 %v162, %v210
      %v212 = vpop.f32.mrb[0].mxu0
      %v213 = vpop.f32.mrb[0].mxu0
      %v214 = vpop.f32.mrb[0].mxu0
      %215 = vdwg.mxu0
      %v216 = vsel %vm169, %v211, -inf
      %217 = vmax.xlane.f32.xlu0 %v216
      %v218 = vpop.xlane.xlu0 %217
      %v219 = vsub.f32 %v211, %v218
      %v220 = vmul.f32 %v219, 1.442695
      %v221 = vpow.pop %v220
      %v222 = vsel %vm169, %v221, 0.0
      %223 = vadd.xlane.f32.xlu0 %v222
      %v224 = vpop.xlane.xlu0 %223
      %v225 = vrcp.pop %v224
      %v226 = vmul.f32 %v221, %v225
      %v227 = vpack.c.bf16 %v226, %v226
      %228 = vrot.lane.b32.xlu0 %v166, 64
      %v229 = vpop.permute.xlu0 %228
      %v231 = vsel %vm169, %v227, 0
      %vm233 = vcmask 1043456
      %v235 = vsel %vm233, %v229, 0
      %237 = vmatprep.subr.bf16.mxu0 0
      %238 = vmatpush1.bf16.msra.mxu0 %v235
      %239 = vmatprep.subr.bf16.mxu0 0
      %240 = vmatpush1.bf16.msra.mxu0 0
      %241 = vmatprep.subr.bf16.mxu0 0
      %242 = vmatpush1.bf16.msra.mxu0 0
      %243 = vmatprep.subr.bf16.mxu0 0
      %244 = vmatpush1.bf16.msra.mxu0 0
      %245 = vmatprep.subr.bf16.mxu0 0
      %246 = vmatpush1.bf16.msra.mxu0 0
      %247 = vmatprep.subr.bf16.mxu0 0
      %248 = vmatpush1.bf16.msra.mxu0 0
      %249 = vmatprep.subr.bf16.mxu0 0
      %250 = vmatpush1.bf16.msra.mxu0 0
      %251 = vmatprep.subr.bf16.mxu0 0
      %252 = vmatpush1.bf16.msra.mxu0 0
      %253 = vmatprep.subr.bf16.mxu0 0
      %254 = vmatpush1.bf16.msra.mxu0 0
      %255 = vmatprep.subr.bf16.mxu0 0
      %256 = vmatpush1.bf16.msra.mxu0 0
      %257 = vmatprep.subr.bf16.mxu0 0
      %258 = vmatpush1.bf16.msra.mxu0 0
      %259 = vmatprep.subr.bf16.mxu0 0
      %260 = vmatpush1.bf16.msra.mxu0 0
      %261 = vmatprep.subr.bf16.mxu0 0
      %262 = vmatpush1.bf16.msra.mxu0 0
      %263 = vmatprep.subr.bf16.mxu0 0
      %264 = vmatpush1.bf16.msra.mxu0 0
      %265 = vmatprep.subr.bf16.mxu0 0
      %266 = vmatpush1.bf16.msra.mxu0 0
      %267 = vmatprep.subr.bf16.mxu0 0
      %268 = vmatpush1.bf16.msra.mxu0 0
      %269 = vmatprep.mubr.bf16.mxu0 0
      %270 = vmatmul.mubr.bf16.gmra.mrb[0].mxu0 %v231
      %v271 = vpop.f32.mrb[0].mxu0
      %v272 = vadd.f32 0.0, %v271
      %v273 = vpop.f32.mrb[0].mxu0
      %v274 = vpop.f32.mrb[0].mxu0
      %v275 = vpop.f32.mrb[0].mxu0
      %276 = vdwg.mxu0
      %v277 = vpack.c.bf16 %v272, %v272
      %vm278 = vcmask 60416
      %279 = vst.msk [vmem:[%s152] sm:$0xf] %vm278, %v277
      %v281 = vunpack.c.l.b16 %v157
      %v282 = vpack.c.b16 %v281, %v281
      %283 = vrot.lane.b32.xlu0 %v282, 120
      %v284 = vpop.permute.xlu0 %283
      %285 = vrot.lane.b32.xlu0 %v166, 88
      %v286 = vpop.permute.xlu0 %285
      %v288 = vsel %vm169, %v284, 0
      %v291 = vsel %vm169, %v286, 0
      %293 = vmatprep.subr.bf16.mxu0 0
      %294 = vmatpush1.bf16.xpose.msra.mxu0 %v291
      %295 = vmatprep.subr.bf16.mxu0 0
      %296 = vmatpush1.bf16.xpose.msra.mxu0 0
      %297 = vmatprep.subr.bf16.mxu0 0
      %298 = vmatpush1.bf16.xpose.msra.mxu0 0
      %299 = vmatprep.subr.bf16.mxu0 0
      %300 = vmatpush1.bf16.xpose.msra.mxu0 0
      %301 = vmatprep.subr.bf16.mxu0 0
      %302 = vmatpush1.bf16.xpose.msra.mxu0 0
      %303 = vmatprep.subr.bf16.mxu0 0
      %304 = vmatpush1.bf16.xpose.msra.mxu0 0
      %305 = vmatprep.subr.bf16.mxu0 0
      %306 = vmatpush1.bf16.xpose.msra.mxu0 0
      %307 = vmatprep.subr.bf16.mxu0 0
      %308 = vmatpush1.bf16.xpose.msra.mxu0 0
      %309 = vmatprep.subr.bf16.mxu0 0
      %310 = vmatpush1.bf16.xpose.msra.mxu0 0
      %311 = vmatprep.subr.bf16.mxu0 0
      %312 = vmatpush1.bf16.xpose.msra.mxu0 0
      %313 = vmatprep.subr.bf16.mxu0 0
      %314 = vmatpush1.bf16.xpose.msra.mxu0 0
      %315 = vmatprep.subr.bf16.mxu0 0
      %316 = vmatpush1.bf16.xpose.msra.mxu0 0
      %317 = vmatprep.subr.bf16.mxu0 0
      %318 = vmatpush1.bf16.xpose.msra.mxu0 0
      %319 = vmatprep.subr.bf16.mxu0 0
      %320 = vmatpush1.bf16.xpose.msra.mxu0 0
      %321 = vmatprep.subr.bf16.mxu0 0
      %322 = vmatpush1.bf16.xpose.msra.mxu0 0
      %323 = vmatprep.subr.bf16.mxu0 0
      %324 = vmatpush1.bf16.xpose.msra.mxu0 0
      %325 = vmatprep.mubr.bf16.mxu0 0
      %326 = vmatmul.mubr.bf16.gmra.mrb[0].mxu0 %v288
      %v327 = vpop.f32.mrb[0].mxu0
      %v328 = vadd.f32 %v162, %v327
      %v329 = vpop.f32.mrb[0].mxu0
      %v330 = vpop.f32.mrb[0].mxu0
      %v331 = vpop.f32.mrb[0].mxu0
      %332 = vdwg.mxu0
      %v333 = vsel %vm169, %v328, -inf
      %334 = vmax.xlane.f32.xlu0 %v333
      %v335 = vpop.xlane.xlu0 %334
      %v336 = vsub.f32 %v328, %v335
      %v337 = vmul.f32 %v336, 1.442695
      %v338 = vpow.pop %v337
      %v339 = vsel %vm169, %v338, 0.0
      %340 = vadd.xlane.f32.xlu0 %v339
      %v341 = vpop.xlane.xlu0 %340
      %v342 = vrcp.pop %v341
      %v343 = vmul.f32 %v338, %v342
      %v344 = vpack.c.bf16 %v343, %v343
      %345 = vrot.lane.b32.xlu0 %v166, 56
      %v346 = vpop.permute.xlu0 %345
      %v348 = vsel %vm169, %v344, 0
      %v351 = vsel %vm233, %v346, 0
      %353 = vmatprep.subr.bf16.mxu0 0
      %354 = vmatpush1.bf16.msra.mxu0 %v351
      %355 = vmatprep.subr.bf16.mxu0 0
      %356 = vmatpush1.bf16.msra.mxu0 0
      %357 = vmatprep.subr.bf16.mxu0 0
      %358 = vmatpush1.bf16.msra.mxu0 0
      %359 = vmatprep.subr.bf16.mxu0 0
      %360 = vmatpush1.bf16.msra.mxu0 0
      %361 = vmatprep.subr.bf16.mxu0 0
      %362 = vmatpush1.bf16.msra.mxu0 0
      %363 = vmatprep.subr.bf16.mxu0 0
      %364 = vmatpush1.bf16.msra.mxu0 0
      %365 = vmatprep.subr.bf16.mxu0 0
      %366 = vmatpush1.bf16.msra.mxu0 0
      %367 = vmatprep.subr.bf16.mxu0 0
      %368 = vmatpush1.bf16.msra.mxu0 0
      %369 = vmatprep.subr.bf16.mxu0 0
      %370 = vmatpush1.bf16.msra.mxu0 0
      %371 = vmatprep.subr.bf16.mxu0 0
      %372 = vmatpush1.bf16.msra.mxu0 0
      %373 = vmatprep.subr.bf16.mxu0 0
      %374 = vmatpush1.bf16.msra.mxu0 0
      %375 = vmatprep.subr.bf16.mxu0 0
      %376 = vmatpush1.bf16.msra.mxu0 0
      %377 = vmatprep.subr.bf16.mxu0 0
      %378 = vmatpush1.bf16.msra.mxu0 0
      %379 = vmatprep.subr.bf16.mxu0 0
      %380 = vmatpush1.bf16.msra.mxu0 0
      %381 = vmatprep.subr.bf16.mxu0 0
      %382 = vmatpush1.bf16.msra.mxu0 0
      %383 = vmatprep.subr.bf16.mxu0 0
      %384 = vmatpush1.bf16.msra.mxu0 0
      %385 = vmatprep.mubr.bf16.mxu0 0
      %386 = vmatmul.mubr.bf16.gmra.mrb[0].mxu0 %v348
      %v387 = vpop.f32.mrb[0].mxu0
      %v388 = vadd.f32 0.0, %v387
      %v389 = vpop.f32.mrb[0].mxu0
      %v390 = vpop.f32.mrb[0].mxu0
      %v391 = vpop.f32.mrb[0].mxu0
      %392 = vdwg.mxu0
      %v393 = vpack.c.bf16 %v388, %v388
      %v395 = vunpack.c.l.b16 %v393
      %v396 = vpack.c.b16 %v395, %v395
      %397 = vrot.lane.b32.xlu0 %v396, 8
      %v398 = vpop.permute.xlu0 %397
      %vm400 = vcmask 126016
      %401 = vst.msk [vmem:[%s152] sm:$0xf] %vm400, %v398
      %402 = vrot.lane.b32.xlu0 %v282, 112
      %v403 = vpop.permute.xlu0 %402
      %404 = vrot.lane.b32.xlu0 %v166, 80
      %v405 = vpop.permute.xlu0 %404
      %v407 = vsel %vm169, %v403, 0
      %v410 = vsel %vm169, %v405, 0
      %412 = vmatprep.subr.bf16.mxu0 0
      %413 = vmatpush1.bf16.xpose.msra.mxu0 %v410
      %414 = vmatprep.subr.bf16.mxu0 0
      %415 = vmatpush1.bf16.xpose.msra.mxu0 0
      %416 = vmatprep.subr.bf16.mxu0 0
      %417 = vmatpush1.bf16.xpose.msra.mxu0 0
      %418 = vmatprep.subr.bf16.mxu0 0
      %419 = vmatpush1.bf16.xpose.msra.mxu0 0
      %420 = vmatprep.subr.bf16.mxu0 0
      %421 = vmatpush1.bf16.xpose.msra.mxu0 0
      %422 = vmatprep.subr.bf16.mxu0 0
      %423 = vmatpush1.bf16.xpose.msra.mxu0 0
      %424 = vmatprep.subr.bf16.mxu0 0
      %425 = vmatpush1.bf16.xpose.msra.mxu0 0
      %426 = vmatprep.subr.bf16.mxu0 0
      %427 = vmatpush1.bf16.xpose.msra.mxu0 0
      %428 = vmatprep.subr.bf16.mxu0 0
      %429 = vmatpush1.bf16.xpose.msra.mxu0 0
      %430 = vmatprep.subr.bf16.mxu0 0
      %431 = vmatpush1.bf16.xpose.msra.mxu0 0
      %432 = vmatprep.subr.bf16.mxu0 0
      %433 = vmatpush1.bf16.xpose.msra.mxu0 0
      %434 = vmatprep.subr.bf16.mxu0 0
      %435 = vmatpush1.bf16.xpose.msra.mxu0 0
      %436 = vmatprep.subr.bf16.mxu0 0
      %437 = vmatpush1.bf16.xpose.msra.mxu0 0
      %438 = vmatprep.subr.bf16.mxu0 0
      %439 = vmatpush1.bf16.xpose.msra.mxu0 0
      %440 = vmatprep.subr.bf16.mxu0 0
      %441 = vmatpush1.bf16.xpose.msra.mxu0 0
      %442 = vmatprep.subr.bf16.mxu0 0
      %443 = vmatpush1.bf16.xpose.msra.mxu0 0
      %444 = vmatprep.mubr.bf16.mxu0 0
      %445 = vmatmul.mubr.bf16.gmra.mrb[0].mxu0 %v407
      %v446 = vpop.f32.mrb[0].mxu0
      %v447 = vadd.f32 %v162, %v446
      %v448 = vpop.f32.mrb[0].mxu0
      %v449 = vpop.f32.mrb[0].mxu0
      %v450 = vpop.f32.mrb[0].mxu0
      %451 = vdwg.mxu0
      %v452 = vsel %vm169, %v447, -inf
      %453 = vmax.xlane.f32.xlu0 %v452
      %v454 = vpop.xlane.xlu0 %453
      %v455 = vsub.f32 %v447, %v454
      %v456 = vmul.f32 %v455, 1.442695
      %v457 = vpow.pop %v456
      %v458 = vsel %vm169, %v457, 0.0
      %459 = vadd.xlane.f32.xlu0 %v458
      %v460 = vpop.xlane.xlu0 %459
      %v461 = vrcp.pop %v460
      %v462 = vmul.f32 %v457, %v461
      %v463 = vpack.c.bf16 %v462, %v462
      %464 = vrot.lane.b32.xlu0 %v166, 48
      %v465 = vpop.permute.xlu0 %464
      %v467 = vsel %vm169, %v463, 0
      %v470 = vsel %vm233, %v465, 0
      %472 = vmatprep.subr.bf16.mxu0 0
      %473 = vmatpush1.bf16.msra.mxu0 %v470
      %474 = vmatprep.subr.bf16.mxu0 0
      %475 = vmatpush1.bf16.msra.mxu0 0
      %476 = vmatprep.subr.bf16.mxu0 0
      %477 = vmatpush1.bf16.msra.mxu0 0
      %478 = vmatprep.subr.bf16.mxu0 0
      %479 = vmatpush1.bf16.msra.mxu0 0
      %480 = vmatprep.subr.bf16.mxu0 0
      %481 = vmatpush1.bf16.msra.mxu0 0
      %482 = vmatprep.subr.bf16.mxu0 0
      %483 = vmatpush1.bf16.msra.mxu0 0
      %484 = vmatprep.subr.bf16.mxu0 0
      %485 = vmatpush1.bf16.msra.mxu0 0
      %486 = vmatprep.subr.bf16.mxu0 0
      %487 = vmatpush1.bf16.msra.mxu0 0
      %488 = vmatprep.subr.bf16.mxu0 0
      %489 = vmatpush1.bf16.msra.mxu0 0
      %490 = vmatprep.subr.bf16.mxu0 0
      %491 = vmatpush1.bf16.msra.mxu0 0
      %492 = vmatprep.subr.bf16.mxu0 0
      %493 = vmatpush1.bf16.msra.mxu0 0
      %494 = vmatprep.subr.bf16.mxu0 0
      %495 = vmatpush1.bf16.msra.mxu0 0
      %496 = vmatprep.subr.bf16.mxu0 0
      %497 = vmatpush1.bf16.msra.mxu0 0
      %498 = vmatprep.subr.bf16.mxu0 0
      %499 = vmatpush1.bf16.msra.mxu0 0
      %500 = vmatprep.subr.bf16.mxu0 0
      %501 = vmatpush1.bf16.msra.mxu0 0
      %502 = vmatprep.subr.bf16.mxu0 0
      %503 = vmatpush1.bf16.msra.mxu0 0
      %504 = vmatprep.mubr.bf16.mxu0 0
      %505 = vmatmul.mubr.bf16.gmra.mrb[0].mxu0 %v467
      %v506 = vpop.f32.mrb[0].mxu0
      %v507 = vadd.f32 0.0, %v506
      %v508 = vpop.f32.mrb[0].mxu0
      %v509 = vpop.f32.mrb[0].mxu0
      %v510 = vpop.f32.mrb[0].mxu0
      %511 = vdwg.mxu0
      %v512 = vpack.c.bf16 %v507, %v507
      %v514 = vunpack.c.l.b16 %v512
      %v515 = vpack.c.b16 %v514, %v514
      %516 = vrot.lane.b32.xlu0 %v515, 16
      %v517 = vpop.permute.xlu0 %516
      %vm519 = vcmask 191616
      %520 = vst.msk [vmem:[%s152] sm:$0xf] %vm519, %v517
      %521 = vrot.lane.b32.xlu0 %v282, 104
      %v522 = vpop.permute.xlu0 %521
      %523 = vrot.lane.b32.xlu0 %v166, 72
      %v524 = vpop.permute.xlu0 %523
      %v526 = vsel %vm169, %v522, 0
      %v529 = vsel %vm169, %v524, 0
      %531 = vmatprep.subr.bf16.mxu0 0
      %532 = vmatpush1.bf16.xpose.msra.mxu0 %v529
      %533 = vmatprep.subr.bf16.mxu0 0
      %534 = vmatpush1.bf16.xpose.msra.mxu0 0
      %535 = vmatprep.subr.bf16.mxu0 0
      %536 = vmatpush1.bf16.xpose.msra.mxu0 0
      %537 = vmatprep.subr.bf16.mxu0 0
      %538 = vmatpush1.bf16.xpose.msra.mxu0 0
      %539 = vmatprep.subr.bf16.mxu0 0
      %540 = vmatpush1.bf16.xpose.msra.mxu0 0
      %541 = vmatprep.subr.bf16.mxu0 0
      %542 = vmatpush1.bf16.xpose.msra.mxu0 0
      %543 = vmatprep.subr.bf16.mxu0 0
      %544 = vmatpush1.bf16.xpose.msra.mxu0 0
      %545 = vmatprep.subr.bf16.mxu0 0
      %546 = vmatpush1.bf16.xpose.msra.mxu0 0
      %547 = vmatprep.subr.bf16.mxu0 0
      %548 = vmatpush1.bf16.xpose.msra.mxu0 0
      %549 = vmatprep.subr.bf16.mxu0 0
      %550 = vmatpush1.bf16.xpose.msra.mxu0 0
      %551 = vmatprep.subr.bf16.mxu0 0
      %552 = vmatpush1.bf16.xpose.msra.mxu0 0
      %553 = vmatprep.subr.bf16.mxu0 0
      %554 = vmatpush1.bf16.xpose.msra.mxu0 0
      %555 = vmatprep.subr.bf16.mxu0 0
      %556 = vmatpush1.bf16.xpose.msra.mxu0 0
      %557 = vmatprep.subr.bf16.mxu0 0
      %558 = vmatpush1.bf16.xpose.msra.mxu0 0
      %559 = vmatprep.subr.bf16.mxu0 0
      %560 = vmatpush1.bf16.xpose.msra.mxu0 0
      %561 = vmatprep.subr.bf16.mxu0 0
      %562 = vmatpush1.bf16.xpose.msra.mxu0 0
      %563 = vmatprep.mubr.bf16.mxu0 0
      %564 = vmatmul.mubr.bf16.gmra.mrb[0].mxu0 %v526
      %v565 = vpop.f32.mrb[0].mxu0
      %v566 = vadd.f32 %v162, %v565
      %v567 = vpop.f32.mrb[0].mxu0
      %v568 = vpop.f32.mrb[0].mxu0
      %v569 = vpop.f32.mrb[0].mxu0
      %570 = vdwg.mxu0
      %v571 = vsel %vm169, %v566, -inf
      %572 = vmax.xlane.f32.xlu0 %v571
      %v573 = vpop.xlane.xlu0 %572
      %v574 = vsub.f32 %v566, %v573
      %v575 = vmul.f32 %v574, 1.442695
      %v576 = vpow.pop %v575
      %v577 = vsel %vm169, %v576, 0.0
      %578 = vadd.xlane.f32.xlu0 %v577
      %v579 = vpop.xlane.xlu0 %578
      %v580 = vrcp.pop %v579
      %v581 = vmul.f32 %v576, %v580
      %v582 = vpack.c.bf16 %v581, %v581
      %583 = vrot.lane.b32.xlu0 %v166, 40
      %v584 = vpop.permute.xlu0 %583
      %v586 = vsel %vm169, %v582, 0
      %v589 = vsel %vm233, %v584, 0
      %591 = vmatprep.subr.bf16.mxu0 0
      %592 = vmatpush1.bf16.msra.mxu0 %v589
      %593 = vmatprep.subr.bf16.mxu0 0
      %594 = vmatpush1.bf16.msra.mxu0 0
      %595 = vmatprep.subr.bf16.mxu0 0
      %596 = vmatpush1.bf16.msra.mxu0 0
      %597 = vmatprep.subr.bf16.mxu0 0
      %598 = vmatpush1.bf16.msra.mxu0 0
      %599 = vmatprep.subr.bf16.mxu0 0
      %600 = vmatpush1.bf16.msra.mxu0 0
      %601 = vmatprep.subr.bf16.mxu0 0
      %602 = vmatpush1.bf16.msra.mxu0 0
      %603 = vmatprep.subr.bf16.mxu0 0
      %604 = vmatpush1.bf16.msra.mxu0 0
      %605 = vmatprep.subr.bf16.mxu0 0
      %606 = vmatpush1.bf16.msra.mxu0 0
      %607 = vmatprep.subr.bf16.mxu0 0
      %608 = vmatpush1.bf16.msra.mxu0 0
      %609 = vmatprep.subr.bf16.mxu0 0
      %610 = vmatpush1.bf16.msra.mxu0 0
      %611 = vmatprep.subr.bf16.mxu0 0
      %612 = vmatpush1.bf16.msra.mxu0 0
      %613 = vmatprep.subr.bf16.mxu0 0
      %614 = vmatpush1.bf16.msra.mxu0 0
      %615 = vmatprep.subr.bf16.mxu0 0
      %616 = vmatpush1.bf16.msra.mxu0 0
      %617 = vmatprep.subr.bf16.mxu0 0
      %618 = vmatpush1.bf16.msra.mxu0 0
      %619 = vmatprep.subr.bf16.mxu0 0
      %620 = vmatpush1.bf16.msra.mxu0 0
      %621 = vmatprep.subr.bf16.mxu0 0
      %622 = vmatpush1.bf16.msra.mxu0 0
      %623 = vmatprep.mubr.bf16.mxu0 0
      %624 = vmatmul.mubr.bf16.gmra.mrb[0].mxu0 %v586
      %v625 = vpop.f32.mrb[0].mxu0
      %v626 = vadd.f32 0.0, %v625
      %v627 = vpop.f32.mrb[0].mxu0
      %v628 = vpop.f32.mrb[0].mxu0
      %v629 = vpop.f32.mrb[0].mxu0
      %630 = vdwg.mxu0
      %v631 = vpack.c.bf16 %v626, %v626
      %v633 = vunpack.c.l.b16 %v631
      %v634 = vpack.c.b16 %v633, %v633
      %635 = vrot.lane.b32.xlu0 %v634, 24
      %v636 = vpop.permute.xlu0 %635
      %vm638 = vcmask 257216
      %639 = vst.msk [vmem:[%s152] sm:$0xf] %vm638, %v636
      %p640 = scmp.lt.s32.totalorder %s13, 1
      %s641 = scalar_select %p640, %s13, 1
      %s642 = smul.addr %s641, 4
      %s643 = scalar_lea.vmem %s2, %s642
      // Predicated region
      $region29: #{bert_encoder_forward.13} parent=27 // pred_check
        %p644 = pneg %p83
      $region30: #{bert_encoder_forward.13} parent=27 // pred_check_branch
        %646 = sbr.rel (%p644) target = $region32
      $region31: #{bert_encoder_forward.13} parent=27 // pred_region
        _
      $region32: #{bert_encoder_forward.13} parent=27 // pred_fallthru
        _
    $region28: #{bert_encoder_forward.13} parent=5 // pred_fallthru
      _
    %p647 = scmp.le.s32.totalorder 2, %s8
    // Predicated region
    $region33: #{bert_encoder_forward.13} parent=5 // pred_check
      %p648 = pneg %p647
    $region34: #{bert_encoder_forward.13} parent=5 // pred_check_branch
      %650 = sbr.rel (%p648) target = $region36
    $region35: #{bert_encoder_forward.13} parent=5 // pred_region
      %s651 = ssub.s32 %s8, 2
      // Predicated region
      $region37: #{bert_encoder_forward.13} parent=35 // pred_check
        %p652 = pneg %p89
      $region38: #{bert_encoder_forward.13} parent=35 // pred_check_branch
        %654 = sbr.rel (%p652) target = $region40
      $region39: #{bert_encoder_forward.13} parent=35 // pred_region
        %p655 = scmp.lt.s32.totalorder %s14, 1
        %s656 = scalar_select %p655, %s14, 1
        %s657 = smul.addr %s656, 4
        %s658 = scalar_lea.vmem %s2, %s657
      $region40: #{bert_encoder_forward.13} parent=35 // pred_fallthru
        _
    $region36: #{bert_encoder_forward.13} parent=5 // pred_fallthru
      _
  $region6: #{bert_encoder_forward.13} parent=0 // loop_footer
    %s12 = sadd.s32 1, %s8
  $region7: #{bert_encoder_forward.13} parent=0 // loop_footer_branch
    %7 = sbr.rel target = $region3
  $region8: #{bert_encoder_forward.13} parent=0 // loop_exit
    _

// kernel: bert_encoder_forward.15
$region0: #{bert_encoder_forward.15}
  #allocation0 [shape = 'u32[]', space=smem, size = 0x4, offset = 0x4, fixed_abs, tag = 'smem constant byte address 0x4 - core index']
  #allocation1 [shape = 'u32[144,128]{1,0:T(1,128)}', space=vmem, size = 0x12000, scoped, tag = 'internal scratch']
  %s0 = inlined_call_operand.vmem [shape: bf16[16,32], index: 0, kind: input, shape index: {}]
  %s1 = inlined_call_operand.vmem [shape: bf16[32,64], index: 1, kind: input, shape index: {}]
  %s2 = inlined_call_operand.vmem [shape: f32[1,64], index: 2, kind: input, shape index: {}]
  %s3 = inlined_call_operand.vmem [shape: bf16[16,64], index: 3, kind: output, shape index: {}]
  %s4 = sld [smem:[#allocation0]]
  $region22: #{bert_encoder_forward.15} parent=0
    _
  %s6 = ssub.s32 1, %s4
  %s7 = scalar_select 0, %s6, %s4
  // Predicated region
  $region2: #{bert_encoder_forward.15} parent=0 // pred_check
    _
  $region3: #{bert_encoder_forward.15} parent=0 // pred_check_branch
    %9 = sbr.rel (0) target = $region5
  $region4: #{bert_encoder_forward.15} parent=0 // pred_region
    _
  $region5: #{bert_encoder_forward.15} parent=0 // pred_fallthru
    _
  // Predicated region
  $region6: #{bert_encoder_forward.15} parent=0 // pred_check
    _
  $region7: #{bert_encoder_forward.15} parent=0 // pred_check_branch
    %11 = sbr.rel (0) target = $region9
  $region8: #{bert_encoder_forward.15} parent=0 // pred_region
    _
  $region9: #{bert_encoder_forward.15} parent=0 // pred_fallthru
    _
  // Predicated region
  $region10: #{bert_encoder_forward.15} parent=0 // pred_check
    _
  $region11: #{bert_encoder_forward.15} parent=0 // pred_check_branch
    %13 = sbr.rel (0) target = $region13
  $region12: #{bert_encoder_forward.15} parent=0 // pred_region
    _
  $region13: #{bert_encoder_forward.15} parent=0 // pred_fallthru
    _
  %v15 = vld [vmem:[%s0] sm:$0xf]
  %v16 = vld [vmem:[%s0 + $0x4] sm:$0xf]
  %v17 = vld [vmem:[%s1] sm:$0xf]
  %v18 = vld [vmem:[%s1 + $0x4] sm:$0xf]
  %v19 = vld [vmem:[%s1 + $0x8] sm:$0xf]
  %v20 = vld [vmem:[%s1 + $0xc] sm:$0xf]
  %v21 = vld [vmem:[%s2] sm:$0x1]
  %v23 = vlaneseq
  %v24 = vshrl.u32 %v23, 7
  %v25 = vsub.s32 0, %v24
  %v26 = vrot.slane %v21, %v25
  %v30 = vunpack.c.l.b16 %v15
  %v31 = vunpack.c.l.b16 %v16
  %v32 = vpack.c.b16 %v31, %v30
  %v37 = vunpack.c.l.b16 %v17
  %v38 = vunpack.c.l.b16 %v18
  %v39 = vunpack.c.l.b16 %v19
  %v40 = vunpack.c.l.b16 %v20
  %v41 = vpack.c.b16 %v38, %v37
  %v42 = vpack.c.b16 %v40, %v39
  %vm45 = vcmask 261120
  %v47 = vsel %vm45, %v32, 0
  %49 = vmatprep.subr.bf16.mxu0 0
  %50 = vmatpush1.bf16.msra.mxu0 %v41
  %51 = vmatprep.subr.bf16.mxu0 0
  %52 = vmatpush1.bf16.msra.mxu0 %v42
  %53 = vmatprep.subr.bf16.mxu0 0
  %54 = vmatpush1.bf16.msra.mxu0 0
  %55 = vmatprep.subr.bf16.mxu0 0
  %56 = vmatpush1.bf16.msra.mxu0 0
  %57 = vmatprep.subr.bf16.mxu0 0
  %58 = vmatpush1.bf16.msra.mxu0 0
  %59 = vmatprep.subr.bf16.mxu0 0
  %60 = vmatpush1.bf16.msra.mxu0 0
  %61 = vmatprep.subr.bf16.mxu0 0
  %62 = vmatpush1.bf16.msra.mxu0 0
  %63 = vmatprep.subr.bf16.mxu0 0
  %64 = vmatpush1.bf16.msra.mxu0 0
  %65 = vmatprep.subr.bf16.mxu0 0
  %66 = vmatpush1.bf16.msra.mxu0 0
  %67 = vmatprep.subr.bf16.mxu0 0
  %68 = vmatpush1.bf16.msra.mxu0 0
  %69 = vmatprep.subr.bf16.mxu0 0
  %70 = vmatpush1.bf16.msra.mxu0 0
  %71 = vmatprep.subr.bf16.mxu0 0
  %72 = vmatpush1.bf16.msra.mxu0 0
  %73 = vmatprep.subr.bf16.mxu0 0
  %74 = vmatpush1.bf16.msra.mxu0 0
  %75 = vmatprep.subr.bf16.mxu0 0
  %76 = vmatpush1.bf16.msra.mxu0 0
  %77 = vmatprep.subr.bf16.mxu0 0
  %78 = vmatpush1.bf16.msra.mxu0 0
  %79 = vmatprep.subr.bf16.mxu0 0
  %80 = vmatpush1.bf16.msra.mxu0 0
  %81 = vmatprep.mubr.bf16.mxu0 0
  %82 = vmatmul.mubr.bf16.gmra.mrb[0].mxu0 %v47
  %v83 = vpop.f32.mrb[0].mxu0
  %v84 = vadd.f32 %v26, %v83
  %v85 = vpop.f32.mrb[0].mxu0
  %v86 = vpop.f32.mrb[0].mxu0
  %v87 = vadd.f32 %v26, %v86
  %v88 = vpop.f32.mrb[0].mxu0
  %89 = vdwg.mxu0
  %v90 = vmul.f32 %v84, 0.5
  %v91 = vmul.f32 %v87, 0.5
  %v92 = vmul.f32 %v84, 0.70710677
  %v93 = vmul.f32 %v87, 0.70710677
  %v94 = verf.f32.pop %v92
  %v95 = verf.f32.pop %v93
  %v96 = vadd.f32 %v94, 1.0
  %v97 = vadd.f32 %v95, 1.0
  %v98 = vmul.f32 %v90, %v96
  %v99 = vmul.f32 %v91, %v97
  %v100 = vpack.c.bf16 %v99, %v98
  %v102 = vunpack.c.l.b16 %v100
  %v103 = vunpack.c.h.b16 %v100
  %v104 = vpack.c.b16 %v102, %v102
  %v105 = vpack.c.b16 %v103, %v103
  %vm108 = vcmask 519168
  %109 = vst.msk [vmem:[%s3] sm:$0xf] %vm108, %v104
  %110 = vst.msk [vmem:[%s3 + $0x4] sm:$0xf] %vm108, %v105
  // Predicated region
  $region14: #{bert_encoder_forward.15} parent=0 // pred_check
    _
  $region15: #{bert_encoder_forward.15} parent=0 // pred_check_branch
    %112 = sbr.rel (0) target = $region17
  $region16: #{bert_encoder_forward.15} parent=0 // pred_region
    _
  $region17: #{bert_encoder_forward.15} parent=0 // pred_fallthru
    _
  // Predicated region
  $region18: #{bert_encoder_forward.15} parent=0 // pred_check
    _
  $region19: #{bert_encoder_forward.15} parent=0 // pred_check_branch
    %114 = sbr.rel (0) target = $region21
  $region20: #{bert_encoder_forward.15} parent=0 // pred_region
    _
  $region21: #{bert_encoder_forward.15} parent=0 // pred_fallthru
    _

// kernel: bert_encoder_forward.16
$region0: #{bert_encoder_forward.16}
  #allocation0 [shape = 'u32[]', space=smem, size = 0x4, offset = 0x4, fixed_abs, tag = 'smem constant byte address 0x4 - core index']
  #allocation1 [shape = 'u32[144,128]{1,0:T(1,128)}', space=vmem, size = 0x12000, scoped, tag = 'internal scratch']
  %s0 = inlined_call_operand.vmem [shape: bf16[16,64], index: 0, kind: input, shape index: {}]
  %s1 = inlined_call_operand.vmem [shape: bf16[64,32], index: 1, kind: input, shape index: {}]
  %s2 = inlined_call_operand.vmem [shape: f32[1,32], index: 2, kind: input, shape index: {}]
  %s3 = inlined_call_operand.vmem [shape: bf16[16,32], index: 3, kind: input, shape index: {}]
  %s4 = inlined_call_operand.vmem [shape: f32[1,32], index: 4, kind: input, shape index: {}]
  %s5 = inlined_call_operand.vmem [shape: f32[1,32], index: 5, kind: input, shape index: {}]
  %s6 = inlined_call_operand.vmem [shape: bf16[16,32], index: 6, kind: output, shape index: {}]
  %s7 = sld [smem:[#allocation0]]
  $region34: #{bert_encoder_forward.16} parent=0
    _
  %s9 = ssub.s32 1, %s7
  %s10 = scalar_select 0, %s9, %s7
  // Predicated region
  $region2: #{bert_encoder_forward.16} parent=0 // pred_check
    _
  $region3: #{bert_encoder_forward.16} parent=0 // pred_check_branch
    %12 = sbr.rel (0) target = $region5
  $region4: #{bert_encoder_forward.16} parent=0 // pred_region
    _
  $region5: #{bert_encoder_forward.16} parent=0 // pred_fallthru
    _
  // Predicated region
  $region6: #{bert_encoder_forward.16} parent=0 // pred_check
    _
  $region7: #{bert_encoder_forward.16} parent=0 // pred_check_branch
    %14 = sbr.rel (0) target = $region9
  $region8: #{bert_encoder_forward.16} parent=0 // pred_region
    _
  $region9: #{bert_encoder_forward.16} parent=0 // pred_fallthru
    _
  // Predicated region
  $region10: #{bert_encoder_forward.16} parent=0 // pred_check
    _
  $region11: #{bert_encoder_forward.16} parent=0 // pred_check_branch
    %16 = sbr.rel (0) target = $region13
  $region12: #{bert_encoder_forward.16} parent=0 // pred_region
    _
  $region13: #{bert_encoder_forward.16} parent=0 // pred_fallthru
    _
  // Predicated region
  $region14: #{bert_encoder_forward.16} parent=0 // pred_check
    _
  $region15: #{bert_encoder_forward.16} parent=0 // pred_check_branch
    %18 = sbr.rel (0) target = $region17
  $region16: #{bert_encoder_forward.16} parent=0 // pred_region
    _
  $region17: #{bert_encoder_forward.16} parent=0 // pred_fallthru
    _
  // Predicated region
  $region18: #{bert_encoder_forward.16} parent=0 // pred_check
    _
  $region19: #{bert_encoder_forward.16} parent=0 // pred_check_branch
    %20 = sbr.rel (0) target = $region21
  $region20: #{bert_encoder_forward.16} parent=0 // pred_region
    _
  $region21: #{bert_encoder_forward.16} parent=0 // pred_fallthru
    _
  // Predicated region
  $region22: #{bert_encoder_forward.16} parent=0 // pred_check
    _
  $region23: #{bert_encoder_forward.16} parent=0 // pred_check_branch
    %22 = sbr.rel (0) target = $region25
  $region24: #{bert_encoder_forward.16} parent=0 // pred_region
    _
  $region25: #{bert_encoder_forward.16} parent=0 // pred_fallthru
    _
  %v24 = vld [vmem:[%s0] sm:$0xf]
  %v25 = vld [vmem:[%s0 + $0x4] sm:$0xf]
  %v26 = vld [vmem:[%s1] sm:$0xf]
  %v27 = vld [vmem:[%s1 + $0x4] sm:$0xf]
  %v28 = vld [vmem:[%s1 + $0x8] sm:$0xf]
  %v29 = vld [vmem:[%s1 + $0xc] sm:$0xf]
  %v30 = vld [vmem:[%s1 + $0x10] sm:$0xf]
  %v31 = vld [vmem:[%s1 + $0x14] sm:$0xf]
  %v32 = vld [vmem:[%s1 + $0x18] sm:$0xf]
  %v33 = vld [vmem:[%s1 + $0x1c] sm:$0xf]
  %v34 = vld [vmem:[%s2] sm:$0x1]
  %v36 = vlaneseq
  %v37 = vshrl.u32 %v36, 7
  %v38 = vsub.s32 0, %v37
  %v39 = vrot.slane %v34, %v38
  %v43 = vunpack.c.l.b16 %v24
  %v44 = vunpack.c.l.b16 %v25
  %v45 = vpack.c.b16 %v44, %v43
  %v54 = vunpack.c.l.b16 %v26
  %v55 = vunpack.c.l.b16 %v27
  %v56 = vunpack.c.l.b16 %v28
  %v57 = vunpack.c.l.b16 %v29
  %v58 = vunpack.c.l.b16 %v30
  %v59 = vunpack.c.l.b16 %v31
  %v60 = vunpack.c.l.b16 %v32
  %v61 = vunpack.c.l.b16 %v33
  %v62 = vpack.c.b16 %v55, %v54
  %v63 = vpack.c.b16 %v57, %v56
  %v64 = vpack.c.b16 %v59, %v58
  %v65 = vpack.c.b16 %v61, %v60
  %vm70 = vcmask 523264
  %v72 = vsel %vm70, %v45, 0
  %74 = vmatprep.subr.bf16.mxu0 0
  %75 = vmatpush1.bf16.msra.mxu0 %v62
  %76 = vmatprep.subr.bf16.mxu0 0
  %77 = vmatpush1.bf16.msra.mxu0 %v63
  %78 = vmatprep.subr.bf16.mxu0 0
  %79 = vmatpush1.bf16.msra.mxu0 %v64
  %80 = vmatprep.subr.bf16.mxu0 0
  %81 = vmatpush1.bf16.msra.mxu0 %v65
  %82 = vmatprep.subr.bf16.mxu0 0
  %83 = vmatpush1.bf16.msra.mxu0 0
  %84 = vmatprep.subr.bf16.mxu0 0
  %85 = vmatpush1.bf16.msra.mxu0 0
  %86 = vmatprep.subr.bf16.mxu0 0
  %87 = vmatpush1.bf16.msra.mxu0 0
  %88 = vmatprep.subr.bf16.mxu0 0
  %89 = vmatpush1.bf16.msra.mxu0 0
  %90 = vmatprep.subr.bf16.mxu0 0
  %91 = vmatpush1.bf16.msra.mxu0 0
  %92 = vmatprep.subr.bf16.mxu0 0
  %93 = vmatpush1.bf16.msra.mxu0 0
  %94 = vmatprep.subr.bf16.mxu0 0
  %95 = vmatpush1.bf16.msra.mxu0 0
  %96 = vmatprep.subr.bf16.mxu0 0
  %97 = vmatpush1.bf16.msra.mxu0 0
  %98 = vmatprep.subr.bf16.mxu0 0
  %99 = vmatpush1.bf16.msra.mxu0 0
  %100 = vmatprep.subr.bf16.mxu0 0
  %101 = vmatpush1.bf16.msra.mxu0 0
  %102 = vmatprep.subr.bf16.mxu0 0
  %103 = vmatpush1.bf16.msra.mxu0 0
  %104 = vmatprep.subr.bf16.mxu0 0
  %105 = vmatpush1.bf16.msra.mxu0 0
  %106 = vmatprep.mubr.bf16.mxu0 0
  %107 = vmatmul.mubr.bf16.gmra.mrb[0].mxu0 %v72
  %v108 = vpop.f32.mrb[0].mxu0
  %v109 = vadd.f32 %v39, %v108
  %v110 = vpop.f32.mrb[0].mxu0
  %v111 = vpop.f32.mrb[0].mxu0
  %v112 = vadd.f32 %v39, %v111
  %v113 = vpop.f32.mrb[0].mxu0
  %114 = vdwg.mxu0
  %v115 = vld [vmem:[%s3] sm:$0xf]
  %v116 = vld [vmem:[%s3 + $0x4] sm:$0xf]
  %v117 = vunpack.c.l.bf16 %v115
  %v118 = vunpack.c.l.bf16 %v116
  %v119 = vadd.f32 %v109, %v117
  %v120 = vadd.f32 %v112, %v118
  %vm121 = vcmask 261120
  %v122 = vsel %vm121, %v119, 0.0
  %123 = vadd.xlane.f32.xlu0 %v122
  %v124 = vpop.xlane.xlu0 %123
  %v125 = vsel %vm121, %v120, 0.0
  %126 = vadd.xlane.f32.xlu0 %v125
  %v127 = vpop.xlane.xlu0 %126
  %v128 = vrcp.pop 32.0
  %v129 = vmul.f32 %v124, %v128
  %v130 = vmul.f32 %v127, %v128
  %v131 = vsub.f32 %v119, %v129
  %v132 = vsub.f32 %v120, %v130
  %v133 = vmul.f32 %v131, %v131
  %v134 = vmul.f32 %v132, %v132
  %v135 = vsel %vm121, %v133, 0.0
  %136 = vadd.xlane.f32.xlu0 %v135
  %v137 = vpop.xlane.xlu0 %136
  %v138 = vsel %vm121, %v134, 0.0
  %139 = vadd.xlane.f32.xlu0 %v138
  %v140 = vpop.xlane.xlu0 %139
  %v141 = vmul.f32 %v137, %v128
  %v142 = vmul.f32 %v140, %v128
  %v143 = vadd.f32 %v141, 1e-12
  %v144 = vadd.f32 %v142, 1e-12
  %v145 = vrsqrt.pop %v143
  %v146 = vrsqrt.pop %v144
  %v147 = vmul.f32 %v131, %v145
  %v148 = vmul.f32 %v132, %v146
  %v149 = vld [vmem:[%s4] sm:$0x1]
  %v151 = vlaneseq
  %v152 = vshrl.u32 %v151, 7
  %v153 = vsub.s32 0, %v152
  %v154 = vrot.slane %v149, %v153
  %v156 = vmul.f32 %v147, %v154
  %v157 = vmul.f32 %v148, %v154
  %v158 = vld [vmem:[%s5] sm:$0x1]
  %v160 = vlaneseq
  %v161 = vshrl.u32 %v160, 7
  %v162 = vsub.s32 0, %v161
  %v163 = vrot.slane %v158, %v162
  %v165 = vadd.f32 %v156, %v163
  %v166 = vadd.f32 %v157, %v163
  %v167 = vpack.c.bf16 %v166, %v165
  %v169 = vunpack.c.l.b16 %v167
  %v170 = vunpack.c.h.b16 %v167
  %v171 = vpack.c.b16 %v169, %v169
  %v172 = vpack.c.b16 %v170, %v170
  %vm175 = vcmask 257024
  %176 = vst.msk [vmem:[%s6] sm:$0xf] %vm175, %v171
  %177 = vst.msk [vmem:[%s6 + $0x4] sm:$0xf] %vm175, %v172
  // Predicated region
  $region26: #{bert_encoder_forward.16} parent=0 // pred_check
    _
  $region27: #{bert_encoder_forward.16} parent=0 // pred_check_branch
    %179 = sbr.rel (0) target = $region29
  $region28: #{bert_encoder_forward.16} parent=0 // pred_region
    _
  $region29: #{bert_encoder_forward.16} parent=0 // pred_fallthru
    _
  // Predicated region
  $region30: #{bert_encoder_forward.16} parent=0 // pred_check
    _
  $region31: #{bert_encoder_forward.16} parent=0 // pred_check_branch
    %181 = sbr.rel (0) target = $region33
  $region32: #{bert_encoder_forward.16} parent=0 // pred_region
    _
  $region33: #{bert_encoder_forward.16} parent=0 // pred_fallthru
    _

</llo_original>
